<compile_context>
chip_gen: v6e
topology: v6e:2x2x1
jax: 0.10.0
libtpu: 0.0.40
codegen_flags: <defaults>
</compile_context>

<pallas_src>
import functools

import jax
import jax.numpy as jnp
from jax.experimental import pallas as pl
from jax.experimental.pallas import tpu as pltpu

_EPS = 1e-5  # nn.BatchNorm2d default eps


# ---------------------------------------------------------------------------
# In-kernel helpers
# ---------------------------------------------------------------------------
def _conv1x7(xc, w_ref, w_len):
    """1x7 'same' convolution along the flattened (..., W) axis of one chunk.

    xc:    (Cin, Pc) activations in compute dtype.  The chunk covers whole
           W-rows, so every shift stays inside the chunk; taps that fall
           outside [0, W) (the conv's (0, 3) zero padding, and row crossings)
           are masked to zero.
    w_ref: (7, Cout, Cin) weight ref, tap-major.
    Returns (Cout, Pc) f32.  No im2col slab is materialised: 7 accumulated
    K=Cin MXU matmuls on rolled+masked views keep VMEM and vst traffic low.
    """
    cin, pc = xc.shape
    cout = w_ref.shape[1]
    # Hoisted once per kernel body and reused by all seven taps.
    wpos = jax.lax.broadcasted_iota(jnp.int32, (1, pc), 1) % w_len
    acc = jnp.zeros((cout, pc), jnp.float32)
    for k in range(7):
        d = k - 3
        if d == 0:
            xs = xc
        else:
            # shifted[:, q] = xc[:, q + d]; wrap-around lands on masked slots.
            shifted = pltpu.roll(xc, (-d) % pc, axis=1)
            valid = jnp.logical_and(wpos + d >= 0, wpos + d < w_len)
            xs = jnp.where(valid, shifted, jnp.zeros((), xc.dtype))
        acc = acc + jnp.dot(w_ref[k], xs, preferred_element_type=jnp.float32)
    return acc


def _accumulate_stats(y, sum_ref, sq_ref):
    """Accumulate per-channel sum / sum-of-squares (f32) across the grid.

    The stats output blocks have a constant index_map, so they stay VMEM
    resident for the whole (sequential, "arbitrary") grid and act as
    accumulators; they are written back to HBM once at the end.
    """
    @pl.when(jnp.logical_and(pl.program_id(0) == 0, pl.program_id(1) == 0))
    def _():
        sum_ref[...] = jnp.zeros_like(sum_ref)
        sq_ref[...] = jnp.zeros_like(sq_ref)

    sum_ref[...] += jnp.sum(y, axis=1, keepdims=True)
    sq_ref[...] += jnp.sum(y * y, axis=1, keepdims=True)


# ---------------------------------------------------------------------------
# Kernels
# ---------------------------------------------------------------------------
def _conv1_kernel(x_ref, w_ref, y_ref, sum_ref, sq_ref, *, w_len, cdtype):
    """Pass 1: y = conv1(x) (fused with the downsample conv when present),
    plus bn1 / bn_ds statistics accumulation."""
    y = _conv1x7(x_ref[0].astype(cdtype), w_ref, w_len)
    y_ref[0] = y
    _accumulate_stats(y, sum_ref, sq_ref)


def _conv2_kernel(y1_ref, s1_ref, b1_ref, w_ref, y2_ref, sum_ref, sq_ref, *,
                  w_len, cdtype):
    """Pass 2: h = relu(bn1(y1)) with precomputed per-channel scale/bias
    (BN math in f32), y2 = conv2(h) with compute-dtype MXU operands, plus
    bn2 statistics accumulation."""
    h = jnp.maximum(y1_ref[0] * s1_ref[...] + b1_ref[...], 0.0)
    y2 = _conv1x7(h.astype(cdtype), w_ref, w_len)
    y2_ref[0] = y2
    _accumulate_stats(y2, sum_ref, sq_ref)


def _finish_ds_kernel(y2_ref, yds_ref, s2_ref, b2_ref, sds_ref, bds_ref,
                      out_ref):
    """Pass 3 (downsample branch): out = relu(bn2(y2) + bn_ds(y_ds))."""
    res = yds_ref[0] * sds_ref[...] + bds_ref[...]
    out_ref[0] = jnp.maximum(y2_ref[0] * s2_ref[...] + b2_ref[...] + res, 0.0)


def _finish_id_kernel(y2_ref, x_ref, s2_ref, b2_ref, out_ref):
    """Pass 3 (identity branch): out = relu(bn2(y2) + x), x in original f32."""
    out_ref[0] = jnp.maximum(
        y2_ref[0] * s2_ref[...] + b2_ref[...] + x_ref[0], 0.0)


# ---------------------------------------------------------------------------
# Wrapper
# ---------------------------------------------------------------------------
def _pick_chunk_cols(hw, w_len, col_bytes, budget=8 << 20):
    """Largest HW-chunk that (a) covers whole W-rows, (b) is lane-aligned
    (multiple of 128) or equals the full HW extent, (c) divides HW exactly,
    and (d) keeps per-step activation blocks under `budget` bytes (sized so
    double-buffered blocks fit v7x's 64 MiB VMEM with headroom).  Falls back
    to the smallest legal chunk if nothing fits."""
    cands = []
    cols = w_len
    while cols <= hw:
        if hw % cols == 0 and (cols % 128 == 0 or cols == hw):
            cands.append(cols)
        cols += w_len
    fitting = [c for c in cands if c * col_bytes <= budget]
    return max(fitting) if fitting else min(cands)


def _bn_affine(s_sum, s_sq, g, b, count):
    """Fold training-mode BN into per-channel (scale, bias), f32.

    One-pass variance from f32 (sum, sumsq); conv outputs are ~zero-mean so
    cancellation is benign here.
    TODO(synk): add a centering sweep if |mean| >> std must be supported.
    """
    mean = s_sum / count
    var = s_sq / count - mean * mean
    scale = g.reshape(-1, 1).astype(jnp.float32) * jax.lax.rsqrt(var + _EPS)
    bias = b.reshape(-1, 1).astype(jnp.float32) - mean * scale
    return scale, bias


def basic_block2_forward(x, params, stride=1, compute_dtype=jnp.bfloat16):
    """BasicBlock2 forward. x is NCHW (PyTorch convention).

    compute_dtype is the MXU operand dtype (bf16 default, f32 accumulation);
    BN statistics, folded scale/bias and the residual add stay f32.
    """
    if stride != 1:
        # TODO(synk): strided (1, s) 1x7 conv not implemented (demo: stride=1).
        raise NotImplementedError("stride > 1 not implemented")

    n, cin, h, w = x.shape
    cout = params["conv1"].shape[0]
    has_ds = "conv_ds" in params
    hw = h * w
    count = float(n * hw)

    def w_taps(wt):  # (Cout, Cin, 1, 7) -> (7, Cout, Cin), tap-major
        return jnp.transpose(wt[:, :, 0, :], (2, 0, 1)).astype(compute_dtype)

    w1 = w_taps(params["conv1"])
    if has_ds:
        # Fuse conv1 and the downsample conv: one weight stack over 2*Cout rows.
        # TODO(synk): pad Cout to a multiple of 8 for general shapes so the
        # (1, Cout, pc) channel-block slices of y1d stay sublane-aligned.
        w1 = jnp.concatenate([w1, w_taps(params["conv_ds"])], axis=1)
    c1d = w1.shape[1]
    w2 = w_taps(params["conv2"])

    # Free view of the NCHW layout -> (N, C, H*W); no HBM transpose round trip.
    x3 = x.reshape(n, cin, hw)

    col_bytes = 4 * (3 * cin + 4 * c1d + 4 * cout)  # rough per-column VMEM cost
    pc = _pick_chunk_cols(hw, w, col_bytes)
    grid = (n, hw // pc)

    itemsize = jnp.dtype(compute_dtype).itemsize
    block_bytes = (pc * 4 * (cin + c1d + 4 * cout)
                   + 7 * (c1d * cin + cout * cout) * itemsize)
    vmem_limit = int(min(max(6 * block_bytes, 32 << 20), 64 << 20))

    def cparams(semantics):
        return pltpu.CompilerParams(dimension_semantics=semantics,
                                    vmem_limit_bytes=vmem_limit)

    def chunk(c, cblk=0):
        return pl.BlockSpec((1, c, pc), lambda i, j, _c=cblk: (i, _c, j))

    def const(shape):
        nd = len(shape)
        return pl.BlockSpec(shape, lambda i, j, _nd=nd: (0,) * _nd)

    # ---- pass 1: conv1 (+ fused conv_ds) + bn1/bn_ds statistics -------------
    y1d, sum1, sq1 = pl.pallas_call(
        functools.partial(_conv1_kernel, w_len=w, cdtype=compute_dtype),
        grid=grid,
        in_specs=[chunk(cin), const(w1.shape)],
        out_specs=[chunk(c1d), const((c1d, 1)), const((c1d, 1))],
        out_shape=[jax.ShapeDtypeStruct((n, c1d, hw), jnp.float32),
                   jax.ShapeDtypeStruct((c1d, 1), jnp.float32),
                   jax.ShapeDtypeStruct((c1d, 1), jnp.float32)],
        compiler_params=cparams(("arbitrary", "arbitrary")),
    )(x3, w1)

    if has_ds:
        sc1, bi1 = _bn_affine(sum1[:cout], sq1[:cout],
                              params["g1"], params["b1"], count)
        scd, bid = _bn_affine(sum1[cout:], sq1[cout:],
                              params["g_ds"], params["b_ds"], count)
    else:
        sc1, bi1 = _bn_affine(sum1, sq1, params["g1"], params["b1"], count)

    # ---- pass 2: bn1 + relu + conv2 + bn2 statistics -------------------------
    y2, sum2, sq2 = pl.pallas_call(
        functools.partial(_conv2_kernel, w_len=w, cdtype=compute_dtype),
        grid=grid,
        in_specs=[chunk(cout), const((cout, 1)), const((cout, 1)),
                  const(w2.shape)],
        out_specs=[chunk(cout), const((cout, 1)), const((cout, 1))],
        out_shape=[jax.ShapeDtypeStruct((n, cout, hw), jnp.float32),
                   jax.ShapeDtypeStruct((cout, 1), jnp.float32),
                   jax.ShapeDtypeStruct((cout, 1), jnp.float32)],
        compiler_params=cparams(("arbitrary", "arbitrary")),
    )(y1d, sc1, bi1, w2)

    sc2, bi2 = _bn_affine(sum2, sq2, params["g2"], params["b2"], count)

    # ---- pass 3: bn2 + residual + relu (pure elementwise, parallel) ----------
    if has_ds:
        out3 = pl.pallas_call(
            _finish_ds_kernel,
            grid=grid,
            in_specs=[chunk(cout), chunk(cout, cblk=1),
                      const((cout, 1)), const((cout, 1)),
                      const((cout, 1)), const((cout, 1))],
            out_specs=chunk(cout),
            out_shape=jax.ShapeDtypeStruct((n, cout, hw), jnp.float32),
            compiler_params=cparams(("parallel", "parallel")),
        )(y2, y1d, sc2, bi2, scd, bid)
    else:
        out3 = pl.pallas_call(
            _finish_id_kernel,
            grid=grid,
            in_specs=[chunk(cout), chunk(cin),
                      const((cout, 1)), const((cout, 1))],
            out_specs=chunk(cout),
            out_shape=jax.ShapeDtypeStruct((n, cout, hw), jnp.float32),
            compiler_params=cparams(("parallel", "parallel")),
        )(y2, x3, sc2, bi2)

    return out3.reshape(n, cout, h, w)


# ---------------------------------------------------------------------------
# Pure-JAX reference (matches the PyTorch module, training-mode BN)
# ---------------------------------------------------------------------------
def reference_forward(x, params, stride=1):
    def conv(xx, wt):
        return jax.lax.conv_general_dilated(
            xx, wt, window_strides=(1, stride), padding=((0, 0), (3, 3)),
            dimension_numbers=("NCHW", "OIHW", "NCHW"))

    def bn(y, g, b):
        mean = jnp.mean(y, axis=(0, 2, 3), keepdims=True)
        var = jnp.mean(jnp.square(y - mean), axis=(0, 2, 3), keepdims=True)
        return ((y - mean) * jax.lax.rsqrt(var + _EPS)
                * g.reshape(1, -1, 1, 1) + b.reshape(1, -1, 1, 1))

    if "conv_ds" in params:
        residual = bn(conv(x, params["conv_ds"]), params["g_ds"], params["b_ds"])
    else:
        residual = x
    out = jax.nn.relu(bn(conv(x, params["conv1"]), params["g1"], params["b1"]))
    out = bn(conv(out, params["conv2"]), params["g2"], params["b2"])
    return jax.nn.relu(out + residual)


if __name__ == "__main__":
    key = jax.random.PRNGKey(0)
    ks = jax.random.split(key, 12)
    N, H, W = 2, 16, 16
    inplanes, planes = 4, 8

    x = jax.random.normal(ks[0], (N, inplanes, H, W), jnp.float32)

    # --- case 1: inplanes != planes (conv + BN downsample branch) ---
    params = {
        "conv1": 0.1 * jax.random.normal(ks[1], (planes, inplanes, 1, 7), jnp.float32),
        "conv2": 0.1 * jax.random.normal(ks[2], (planes, planes, 1, 7), jnp.float32),
        "conv_ds": 0.1 * jax.random.normal(ks[3], (planes, inplanes, 1, 7), jnp.float32),
        "g1": 1.0 + 0.1 * jax.random.normal(ks[4], (planes,), jnp.float32),
        "b1": 0.1 * jax.random.normal(ks[5], (planes,), jnp.float32),
        "g2": 1.0 + 0.1 * jax.random.normal(ks[6], (planes,), jnp.float32),
        "b2": 0.1 * jax.random.normal(ks[7], (planes,), jnp.float32),
        "g_ds": 1.0 + 0.1 * jax.random.normal(ks[8], (planes,), jnp.float32),
        "b_ds": 0.1 * jax.random.normal(ks[9], (planes,), jnp.float32),
    }
    ref = reference_forward(x, params)

    # f32 MXU operands: tight match to the f32 reference.
    out_f32 = jax.block_until_ready(
        basic_block2_forward(x, params, compute_dtype=jnp.float32))
    assert out_f32.shape == (N, planes, H, W)
    assert jnp.allclose(out_f32, ref, rtol=1e-3, atol=1e-3), \
        float(jnp.max(jnp.abs(out_f32 - ref)))

    # bf16 MXU operands (default): native MXU dtype, looser tolerance.
    out_bf16 = jax.block_until_ready(basic_block2_forward(x, params))
    assert jnp.allclose(out_bf16, ref, rtol=5e-2, atol=5e-2), \
        float(jnp.max(jnp.abs(out_bf16 - ref)))

    # --- case 2: inplanes == planes (identity residual, kept in f32) ---
    params_id = {
        "conv1": 0.1 * jax.random.normal(ks[10], (inplanes, inplanes, 1, 7), jnp.float32),
        "conv2": 0.1 * jax.random.normal(ks[11], (inplanes, inplanes, 1, 7), jnp.float32),
        "g1": jnp.ones((inplanes,), jnp.float32),
        "b1": jnp.zeros((inplanes,), jnp.float32),
        "g2": jnp.ones((inplanes,), jnp.float32),
        "b2": jnp.zeros((inplanes,), jnp.float32),
    }
    ref_id = reference_forward(x, params_id)
    out_id = jax.block_until_ready(basic_block2_forward(x, params_id))
    assert jnp.allclose(out_id, ref_id, rtol=5e-2, atol=5e-2), \
        float(jnp.max(jnp.abs(out_id - ref_id)))

    print("KERNEL_OK")
</pallas_src>

<mosaic_0001>
module attributes {stable_mosaic.version = 11 : i64} {
  func.func @_conv1_kernel(%arg0: i32, %arg1: i32, %arg2: memref<1x4x256xf32, #tpu.memory_space<vmem>>, %arg3: memref<7x16x4xf32, #tpu.memory_space<vmem>>, %arg4: memref<1x16x256xf32, #tpu.memory_space<vmem>>, %arg5: memref<16x1xf32, #tpu.memory_space<vmem>>, %arg6: memref<16x1xf32, #tpu.memory_space<vmem>>) attributes {dimension_semantics = [#tpu.dimension_semantics<arbitrary>, #tpu.dimension_semantics<arbitrary>], iteration_bounds = array<i64: 2, 1>, scalar_prefetch = 0 : i64, scratch_operands = 0 : i64, tpu.core_type = #tpu.core_type<tc>, window_params = [{transform_indices = @transform_0, window_bounds = array<i64: 1, 4, 256>}, {pipeline_mode = #tpu.pipeline_mode<synchronous>, transform_indices = @transform_1, window_bounds = array<i64: 7, 16, 4>}, {transform_indices = @transform_2, window_bounds = array<i64: 1, 16, 256>}, {pipeline_mode = #tpu.pipeline_mode<synchronous>, transform_indices = @transform_3, window_bounds = array<i64: 16, 1>}, {pipeline_mode = #tpu.pipeline_mode<synchronous>, transform_indices = @transform_4, window_bounds = array<i64: 16, 1>}]} {
    %c0 = arith.constant 0 : index
    %c0_0 = arith.constant 0 : index
    %c0_1 = arith.constant 0 : index
    %0 = vector.load %arg2[%c0, %c0_0, %c0_1] : memref<1x4x256xf32, #tpu.memory_space<vmem>>, vector<1x4x256xf32>
    %1 = vector.shape_cast %0 : vector<1x4x256xf32> to vector<4x256xf32>
    %2 = tpu.iota {dimensions = array<i32: 1>} : vector<1x256xi32>
    %c16_i32 = arith.constant 16 : i32
    %c0_i32 = arith.constant 0 : i32
    %3 = arith.cmpi eq, %c16_i32, %c0_i32 : i32
    %c1_i32 = arith.constant 1 : i32
    %4 = arith.select %3, %c1_i32, %c16_i32 : i32
    %5 = vector.broadcast %4 : i32 to vector<1x256xi32>
    %6 = arith.remsi %2, %5 : vector<1x256xi32>
    %c0_i32_2 = arith.constant 0 : i32
    %7 = vector.broadcast %c0_i32_2 : i32 to vector<1x256xi32>
    %8 = arith.cmpi ne, %6, %7 : vector<1x256xi32>
    %c0_i32_3 = arith.constant 0 : i32
    %9 = vector.broadcast %c0_i32_3 : i32 to vector<1x256xi32>
    %10 = arith.cmpi slt, %6, %9 : vector<1x256xi32>
    %c0_i32_4 = arith.constant 0 : i32
    %11 = arith.cmpi slt, %4, %c0_i32_4 : i32
    %12 = vector.broadcast %11 : i1 to vector<1x256xi1>
    %13 = vector.broadcast %12 : vector<1x256xi1> to vector<1x256xi1>
    %14 = arith.xori %10, %13 : vector<1x256xi1>
    %15 = arith.andi %14, %8 : vector<1x256xi1>
    %16 = vector.broadcast %4 : i32 to vector<1x256xi32>
    %17 = arith.addi %6, %16 : vector<1x256xi32>
    %18 = arith.select %15, %17, %6 : vector<1x256xi1>, vector<1x256xi32>
    %cst = arith.constant 0.000000e+00 : f32
    %19 = vector.broadcast %cst : f32 to vector<16x256xf32>
    %c3_i32 = arith.constant 3 : i32
    %20 = tpu.dynamic_rotate %1 by %c3_i32 dim 1 : vector<4x256xf32>, i32 -> vector<4x256xf32>
    %c-3_i32 = arith.constant -3 : i32
    %21 = vector.broadcast %c-3_i32 : i32 to vector<1x256xi32>
    %22 = arith.addi %18, %21 : vector<1x256xi32>
    %c0_i32_5 = arith.constant 0 : i32
    %23 = vector.broadcast %c0_i32_5 : i32 to vector<1x256xi32>
    %24 = arith.cmpi sge, %22, %23 : vector<1x256xi32>
    %c-3_i32_6 = arith.constant -3 : i32
    %25 = vector.broadcast %c-3_i32_6 : i32 to vector<1x256xi32>
    %26 = arith.addi %18, %25 : vector<1x256xi32>
    %c16_i32_7 = arith.constant 16 : i32
    %27 = vector.broadcast %c16_i32_7 : i32 to vector<1x256xi32>
    %28 = arith.cmpi slt, %26, %27 : vector<1x256xi32>
    %29 = arith.andi %24, %28 : vector<1x256xi1>
    %cst_8 = arith.constant 0.000000e+00 : f32
    %30 = vector.shape_cast %29 : vector<1x256xi1> to vector<1x256xi1>
    %31 = vector.broadcast %30 : vector<1x256xi1> to vector<4x256xi1>
    %32 = vector.broadcast %cst_8 : f32 to vector<4x256xf32>
    %33 = arith.select %31, %20, %32 : vector<4x256xi1>, vector<4x256xf32>
    %c0_9 = arith.constant 0 : index
    %c0_10 = arith.constant 0 : index
    %c0_11 = arith.constant 0 : index
    %34 = vector.load %arg3[%c0_9, %c0_10, %c0_11] : memref<7x16x4xf32, #tpu.memory_space<vmem>>, vector<1x16x4xf32>
    %35 = vector.shape_cast %34 : vector<1x16x4xf32> to vector<16x4xf32>
    %cst_12 = arith.constant dense<0.000000e+00> : vector<16x256xf32>
    %36 = tpu.matmul %35, %33, %cst_12 {dimension_numbers = #tpu.dot_dimension_numbers<[1], [0], [0], [1], [0, 0, 1, 1], [], []>} : vector<16x4xf32>, vector<4x256xf32>, vector<16x256xf32> -> vector<16x256xf32>
    %37 = arith.addf %19, %36 : vector<16x256xf32>
    %c2_i32 = arith.constant 2 : i32
    %38 = tpu.dynamic_rotate %1 by %c2_i32 dim 1 : vector<4x256xf32>, i32 -> vector<4x256xf32>
    %c-2_i32 = arith.constant -2 : i32
    %39 = vector.broadcast %c-2_i32 : i32 to vector<1x256xi32>
    %40 = arith.addi %18, %39 : vector<1x256xi32>
    %c0_i32_13 = arith.constant 0 : i32
    %41 = vector.broadcast %c0_i32_13 : i32 to vector<1x256xi32>
    %42 = arith.cmpi sge, %40, %41 : vector<1x256xi32>
    %c-2_i32_14 = arith.constant -2 : i32
    %43 = vector.broadcast %c-2_i32_14 : i32 to vector<1x256xi32>
    %44 = arith.addi %18, %43 : vector<1x256xi32>
    %c16_i32_15 = arith.constant 16 : i32
    %45 = vector.broadcast %c16_i32_15 : i32 to vector<1x256xi32>
    %46 = arith.cmpi slt, %44, %45 : vector<1x256xi32>
    %47 = arith.andi %42, %46 : vector<1x256xi1>
    %cst_16 = arith.constant 0.000000e+00 : f32
    %48 = vector.shape_cast %47 : vector<1x256xi1> to vector<1x256xi1>
    %49 = vector.broadcast %48 : vector<1x256xi1> to vector<4x256xi1>
    %50 = vector.broadcast %cst_16 : f32 to vector<4x256xf32>
    %51 = arith.select %49, %38, %50 : vector<4x256xi1>, vector<4x256xf32>
    %c1 = arith.constant 1 : index
    %c0_17 = arith.constant 0 : index
    %c0_18 = arith.constant 0 : index
    %52 = vector.load %arg3[%c1, %c0_17, %c0_18] : memref<7x16x4xf32, #tpu.memory_space<vmem>>, vector<1x16x4xf32>
    %53 = vector.shape_cast %52 : vector<1x16x4xf32> to vector<16x4xf32>
    %cst_19 = arith.constant dense<0.000000e+00> : vector<16x256xf32>
    %54 = tpu.matmul %53, %51, %cst_19 {dimension_numbers = #tpu.dot_dimension_numbers<[1], [0], [0], [1], [0, 0, 1, 1], [], []>} : vector<16x4xf32>, vector<4x256xf32>, vector<16x256xf32> -> vector<16x256xf32>
    %55 = arith.addf %37, %54 : vector<16x256xf32>
    %c1_i32_20 = arith.constant 1 : i32
    %56 = tpu.dynamic_rotate %1 by %c1_i32_20 dim 1 : vector<4x256xf32>, i32 -> vector<4x256xf32>
    %c-1_i32 = arith.constant -1 : i32
    %57 = vector.broadcast %c-1_i32 : i32 to vector<1x256xi32>
    %58 = arith.addi %18, %57 : vector<1x256xi32>
    %c0_i32_21 = arith.constant 0 : i32
    %59 = vector.broadcast %c0_i32_21 : i32 to vector<1x256xi32>
    %60 = arith.cmpi sge, %58, %59 : vector<1x256xi32>
    %c-1_i32_22 = arith.constant -1 : i32
    %61 = vector.broadcast %c-1_i32_22 : i32 to vector<1x256xi32>
    %62 = arith.addi %18, %61 : vector<1x256xi32>
    %c16_i32_23 = arith.constant 16 : i32
    %63 = vector.broadcast %c16_i32_23 : i32 to vector<1x256xi32>
    %64 = arith.cmpi slt, %62, %63 : vector<1x256xi32>
    %65 = arith.andi %60, %64 : vector<1x256xi1>
    %cst_24 = arith.constant 0.000000e+00 : f32
    %66 = vector.shape_cast %65 : vector<1x256xi1> to vector<1x256xi1>
    %67 = vector.broadcast %66 : vector<1x256xi1> to vector<4x256xi1>
    %68 = vector.broadcast %cst_24 : f32 to vector<4x256xf32>
    %69 = arith.select %67, %56, %68 : vector<4x256xi1>, vector<4x256xf32>
    %c2 = arith.constant 2 : index
    %c0_25 = arith.constant 0 : index
    %c0_26 = arith.constant 0 : index
    %70 = vector.load %arg3[%c2, %c0_25, %c0_26] : memref<7x16x4xf32, #tpu.memory_space<vmem>>, vector<1x16x4xf32>
    %71 = vector.shape_cast %70 : vector<1x16x4xf32> to vector<16x4xf32>
    %cst_27 = arith.constant dense<0.000000e+00> : vector<16x256xf32>
    %72 = tpu.matmul %71, %69, %cst_27 {dimension_numbers = #tpu.dot_dimension_numbers<[1], [0], [0], [1], [0, 0, 1, 1], [], []>} : vector<16x4xf32>, vector<4x256xf32>, vector<16x256xf32> -> vector<16x256xf32>
    %73 = arith.addf %55, %72 : vector<16x256xf32>
    %c3 = arith.constant 3 : index
    %c0_28 = arith.constant 0 : index
    %c0_29 = arith.constant 0 : index
    %74 = vector.load %arg3[%c3, %c0_28, %c0_29] : memref<7x16x4xf32, #tpu.memory_space<vmem>>, vector<1x16x4xf32>
    %75 = vector.shape_cast %74 : vector<1x16x4xf32> to vector<16x4xf32>
    %cst_30 = arith.constant dense<0.000000e+00> : vector<16x256xf32>
    %76 = tpu.matmul %75, %1, %cst_30 {dimension_numbers = #tpu.dot_dimension_numbers<[1], [0], [0], [1], [0, 0, 1, 1], [], []>} : vector<16x4xf32>, vector<4x256xf32>, vector<16x256xf32> -> vector<16x256xf32>
    %77 = arith.addf %73, %76 : vector<16x256xf32>
    %c255_i32 = arith.constant 255 : i32
    %78 = tpu.dynamic_rotate %1 by %c255_i32 dim 1 : vector<4x256xf32>, i32 -> vector<4x256xf32>
    %c1_i32_31 = arith.constant 1 : i32
    %79 = vector.broadcast %c1_i32_31 : i32 to vector<1x256xi32>
    %80 = arith.addi %18, %79 : vector<1x256xi32>
    %c0_i32_32 = arith.constant 0 : i32
    %81 = vector.broadcast %c0_i32_32 : i32 to vector<1x256xi32>
    %82 = arith.cmpi sge, %80, %81 : vector<1x256xi32>
    %c1_i32_33 = arith.constant 1 : i32
    %83 = vector.broadcast %c1_i32_33 : i32 to vector<1x256xi32>
    %84 = arith.addi %18, %83 : vector<1x256xi32>
    %c16_i32_34 = arith.constant 16 : i32
    %85 = vector.broadcast %c16_i32_34 : i32 to vector<1x256xi32>
    %86 = arith.cmpi slt, %84, %85 : vector<1x256xi32>
    %87 = arith.andi %82, %86 : vector<1x256xi1>
    %cst_35 = arith.constant 0.000000e+00 : f32
    %88 = vector.shape_cast %87 : vector<1x256xi1> to vector<1x256xi1>
    %89 = vector.broadcast %88 : vector<1x256xi1> to vector<4x256xi1>
    %90 = vector.broadcast %cst_35 : f32 to vector<4x256xf32>
    %91 = arith.select %89, %78, %90 : vector<4x256xi1>, vector<4x256xf32>
    %c4 = arith.constant 4 : index
    %c0_36 = arith.constant 0 : index
    %c0_37 = arith.constant 0 : index
    %92 = vector.load %arg3[%c4, %c0_36, %c0_37] : memref<7x16x4xf32, #tpu.memory_space<vmem>>, vector<1x16x4xf32>
    %93 = vector.shape_cast %92 : vector<1x16x4xf32> to vector<16x4xf32>
    %cst_38 = arith.constant dense<0.000000e+00> : vector<16x256xf32>
    %94 = tpu.matmul %93, %91, %cst_38 {dimension_numbers = #tpu.dot_dimension_numbers<[1], [0], [0], [1], [0, 0, 1, 1], [], []>} : vector<16x4xf32>, vector<4x256xf32>, vector<16x256xf32> -> vector<16x256xf32>
    %95 = arith.addf %77, %94 : vector<16x256xf32>
    %c254_i32 = arith.constant 254 : i32
    %96 = tpu.dynamic_rotate %1 by %c254_i32 dim 1 : vector<4x256xf32>, i32 -> vector<4x256xf32>
    %c2_i32_39 = arith.constant 2 : i32
    %97 = vector.broadcast %c2_i32_39 : i32 to vector<1x256xi32>
    %98 = arith.addi %18, %97 : vector<1x256xi32>
    %c0_i32_40 = arith.constant 0 : i32
    %99 = vector.broadcast %c0_i32_40 : i32 to vector<1x256xi32>
    %100 = arith.cmpi sge, %98, %99 : vector<1x256xi32>
    %c2_i32_41 = arith.constant 2 : i32
    %101 = vector.broadcast %c2_i32_41 : i32 to vector<1x256xi32>
    %102 = arith.addi %18, %101 : vector<1x256xi32>
    %c16_i32_42 = arith.constant 16 : i32
    %103 = vector.broadcast %c16_i32_42 : i32 to vector<1x256xi32>
    %104 = arith.cmpi slt, %102, %103 : vector<1x256xi32>
    %105 = arith.andi %100, %104 : vector<1x256xi1>
    %cst_43 = arith.constant 0.000000e+00 : f32
    %106 = vector.shape_cast %105 : vector<1x256xi1> to vector<1x256xi1>
    %107 = vector.broadcast %106 : vector<1x256xi1> to vector<4x256xi1>
    %108 = vector.broadcast %cst_43 : f32 to vector<4x256xf32>
    %109 = arith.select %107, %96, %108 : vector<4x256xi1>, vector<4x256xf32>
    %c5 = arith.constant 5 : index
    %c0_44 = arith.constant 0 : index
    %c0_45 = arith.constant 0 : index
    %110 = vector.load %arg3[%c5, %c0_44, %c0_45] : memref<7x16x4xf32, #tpu.memory_space<vmem>>, vector<1x16x4xf32>
    %111 = vector.shape_cast %110 : vector<1x16x4xf32> to vector<16x4xf32>
    %cst_46 = arith.constant dense<0.000000e+00> : vector<16x256xf32>
    %112 = tpu.matmul %111, %109, %cst_46 {dimension_numbers = #tpu.dot_dimension_numbers<[1], [0], [0], [1], [0, 0, 1, 1], [], []>} : vector<16x4xf32>, vector<4x256xf32>, vector<16x256xf32> -> vector<16x256xf32>
    %113 = arith.addf %95, %112 : vector<16x256xf32>
    %c253_i32 = arith.constant 253 : i32
    %114 = tpu.dynamic_rotate %1 by %c253_i32 dim 1 : vector<4x256xf32>, i32 -> vector<4x256xf32>
    %c3_i32_47 = arith.constant 3 : i32
    %115 = vector.broadcast %c3_i32_47 : i32 to vector<1x256xi32>
    %116 = arith.addi %18, %115 : vector<1x256xi32>
    %c0_i32_48 = arith.constant 0 : i32
    %117 = vector.broadcast %c0_i32_48 : i32 to vector<1x256xi32>
    %118 = arith.cmpi sge, %116, %117 : vector<1x256xi32>
    %c3_i32_49 = arith.constant 3 : i32
    %119 = vector.broadcast %c3_i32_49 : i32 to vector<1x256xi32>
    %120 = arith.addi %18, %119 : vector<1x256xi32>
    %c16_i32_50 = arith.constant 16 : i32
    %121 = vector.broadcast %c16_i32_50 : i32 to vector<1x256xi32>
    %122 = arith.cmpi slt, %120, %121 : vector<1x256xi32>
    %123 = arith.andi %118, %122 : vector<1x256xi1>
    %cst_51 = arith.constant 0.000000e+00 : f32
    %124 = vector.shape_cast %123 : vector<1x256xi1> to vector<1x256xi1>
    %125 = vector.broadcast %124 : vector<1x256xi1> to vector<4x256xi1>
    %126 = vector.broadcast %cst_51 : f32 to vector<4x256xf32>
    %127 = arith.select %125, %114, %126 : vector<4x256xi1>, vector<4x256xf32>
    %c6 = arith.constant 6 : index
    %c0_52 = arith.constant 0 : index
    %c0_53 = arith.constant 0 : index
    %128 = vector.load %arg3[%c6, %c0_52, %c0_53] : memref<7x16x4xf32, #tpu.memory_space<vmem>>, vector<1x16x4xf32>
    %129 = vector.shape_cast %128 : vector<1x16x4xf32> to vector<16x4xf32>
    %cst_54 = arith.constant dense<0.000000e+00> : vector<16x256xf32>
    %130 = tpu.matmul %129, %127, %cst_54 {dimension_numbers = #tpu.dot_dimension_numbers<[1], [0], [0], [1], [0, 0, 1, 1], [], []>} : vector<16x4xf32>, vector<4x256xf32>, vector<16x256xf32> -> vector<16x256xf32>
    %131 = arith.addf %113, %130 : vector<16x256xf32>
    %c0_55 = arith.constant 0 : index
    %c0_56 = arith.constant 0 : index
    %c0_57 = arith.constant 0 : index
    %132 = vector.load %arg4[%c0_55, %c0_56, %c0_57] : memref<1x16x256xf32, #tpu.memory_space<vmem>>, vector<1x16x256xf32>
    %133 = vector.shape_cast %132 : vector<1x16x256xf32> to vector<16x256xf32>
    %134 = vector.shape_cast %131 : vector<16x256xf32> to vector<1x16x256xf32>
    tpu.vector_store %arg4[%c0_55, %c0_56, %c0_57], %134 {strides = array<i32>} : memref<1x16x256xf32, #tpu.memory_space<vmem>>, vector<1x16x256xf32>,
    %c0_i32_58 = arith.constant 0 : i32
    %135 = arith.cmpi eq, %arg0, %c0_i32_58 : i32
    %c0_i32_59 = arith.constant 0 : i32
    %136 = arith.cmpi eq, %arg1, %c0_i32_59 : i32
    %137 = arith.andi %135, %136 : i1
    %138 = arith.extui %137 : i1 to i32
    %c0_i32_60 = arith.constant 0 : i32
    %139 = arith.cmpi ne, %138, %c0_i32_60 : i32
    scf.if %139 {
      %cst_71 = arith.constant 0.000000e+00 : f32
      %151 = vector.broadcast %cst_71 : f32 to vector<16x1xf32>
      %c0_72 = arith.constant 0 : index
      %c0_73 = arith.constant 0 : index
      %152 = vector.load %arg5[%c0_72, %c0_73] : memref<16x1xf32, #tpu.memory_space<vmem>>, vector<16x1xf32>
      tpu.vector_store %arg5[%c0_72, %c0_73], %151 {strides = array<i32>} : memref<16x1xf32, #tpu.memory_space<vmem>>, vector<16x1xf32>,
      %cst_74 = arith.constant 0.000000e+00 : f32
      %153 = vector.broadcast %cst_74 : f32 to vector<16x1xf32>
      %c0_75 = arith.constant 0 : index
      %c0_76 = arith.constant 0 : index
      %154 = vector.load %arg6[%c0_75, %c0_76] : memref<16x1xf32, #tpu.memory_space<vmem>>, vector<16x1xf32>
      tpu.vector_store %arg6[%c0_75, %c0_76], %153 {strides = array<i32>} : memref<16x1xf32, #tpu.memory_space<vmem>>, vector<16x1xf32>,
    } else {
    }
    %c0_61 = arith.constant 0 : index
    %c0_62 = arith.constant 0 : index
    %140 = vector.load %arg5[%c0_61, %c0_62] : memref<16x1xf32, #tpu.memory_space<vmem>>, vector<16x1xf32>
    %cst_63 = arith.constant dense<0.000000e+00> : vector<16xf32>
    %141 = vector.multi_reduction <add>, %131, %cst_63 [1] : vector<16x256xf32> to vector<16xf32>
    %142 = vector.shape_cast %141 : vector<16xf32> to vector<16x1xf32>
    %143 = arith.addf %140, %142 : vector<16x1xf32>
    %c0_64 = arith.constant 0 : index
    %c0_65 = arith.constant 0 : index
    %144 = vector.load %arg5[%c0_64, %c0_65] : memref<16x1xf32, #tpu.memory_space<vmem>>, vector<16x1xf32>
    tpu.vector_store %arg5[%c0_64, %c0_65], %143 {strides = array<i32>} : memref<16x1xf32, #tpu.memory_space<vmem>>, vector<16x1xf32>,
    %c0_66 = arith.constant 0 : index
    %c0_67 = arith.constant 0 : index
    %145 = vector.load %arg6[%c0_66, %c0_67] : memref<16x1xf32, #tpu.memory_space<vmem>>, vector<16x1xf32>
    %146 = arith.mulf %131, %131 : vector<16x256xf32>
    %cst_68 = arith.constant dense<0.000000e+00> : vector<16xf32>
    %147 = vector.multi_reduction <add>, %146, %cst_68 [1] : vector<16x256xf32> to vector<16xf32>
    %148 = vector.shape_cast %147 : vector<16xf32> to vector<16x1xf32>
    %149 = arith.addf %145, %148 : vector<16x1xf32>
    %c0_69 = arith.constant 0 : index
    %c0_70 = arith.constant 0 : index
    %150 = vector.load %arg6[%c0_69, %c0_70] : memref<16x1xf32, #tpu.memory_space<vmem>>, vector<16x1xf32>
    tpu.vector_store %arg6[%c0_69, %c0_70], %149 {strides = array<i32>} : memref<16x1xf32, #tpu.memory_space<vmem>>, vector<16x1xf32>,
    return
  }
  func.func @transform_0(%arg0: i32, %arg1: i32) -> (i32, i32, i32) {
    %c0_i32 = arith.constant 0 : i32
    %c0_i32_0 = arith.constant 0 : i32
    return %arg0, %c0_i32, %arg1 : i32, i32, i32
  }
  func.func @transform_1(%arg0: i32, %arg1: i32) -> (i32, i32, i32) {
    %c0_i32 = arith.constant 0 : i32
    %c0_i32_0 = arith.constant 0 : i32
    %c0_i32_1 = arith.constant 0 : i32
    %c0_i32_2 = arith.constant 0 : i32
    return %c0_i32, %c0_i32_0, %c0_i32_1 : i32, i32, i32
  }
  func.func @transform_2(%arg0: i32, %arg1: i32) -> (i32, i32, i32) {
    %c0_i32 = arith.constant 0 : i32
    %c0_i32_0 = arith.constant 0 : i32
    return %arg0, %c0_i32, %arg1 : i32, i32, i32
  }
  func.func @transform_3(%arg0: i32, %arg1: i32) -> (i32, i32) {
    %c0_i32 = arith.constant 0 : i32
    %c0_i32_0 = arith.constant 0 : i32
    %c0_i32_1 = arith.constant 0 : i32
    return %c0_i32, %c0_i32_0 : i32, i32
  }
  func.func @transform_4(%arg0: i32, %arg1: i32) -> (i32, i32) {
    %c0_i32 = arith.constant 0 : i32
    %c0_i32_0 = arith.constant 0 : i32
    %c0_i32_1 = arith.constant 0 : i32
    return %c0_i32, %c0_i32_0 : i32, i32
  }
}

</mosaic_0001>

<llo_original>
// kernel: tpu_custom_call.1
$region0: #{tpu_custom_call.1}
  #allocation0 [shape = 'u32[]', space=smem, size = 0x4, offset = 0x4, fixed_abs, tag = 'smem constant byte address 0x4 - core index']
  #allocation1 [shape = 'u32[144,128]{1,0:T(1,128)}', space=vmem, size = 0x12000, scoped, tag = 'internal scratch']
  %s0 = inlined_call_operand.vmem [shape: f32[2,4,256], index: 0, kind: input, shape index: {}]
  %s1 = inlined_call_operand.vmem [shape: f32[7,16,4], index: 1, kind: input, shape index: {}]
  %s2 = inlined_call_operand.hbm [shape: f32[2,16,256], index: 2, kind: output, shape index: {0}]
  %s3 = inlined_call_operand.vmem [shape: f32[16,1], index: 3, kind: output, shape index: {1}]
  %s4 = inlined_call_operand.vmem [shape: f32[16,1], index: 4, kind: output, shape index: {2}]
  %5 = xla_tuple %s2, %s3, %s4
  %s6 = sld [smem:[#allocation0]]
  $region61: #{tpu_custom_call.1} parent=0
    _
  %s8 = ssub.s32 1, %s6
  %s9 = scalar_select 0, %s8, %s6
  $region1: #{tpu_custom_call.1} parent=0
    #allocation2 [shape = 'u8[32768]{0}', space=vmem, size = 0x8000, scoped, tag = 'output window, operand 0']
    #allocation3 [shape = 's32[2]{0}', space=sflag, size = 0x8, scoped, tag = 'scoped memory for tpu_custom_call.1']
    %10 = vsyncpa [#allocation3], 0
    %s11 = scalar_lea.sflag [#allocation3], 1
    %12 = vsyncpa %s11, 0
    loop: start=0, step=1, limit=4
    $region2: #{tpu_custom_call.1} parent=1 // loop_pre_header
      _
    $region3: #{tpu_custom_call.1} parent=1 // loop_header
      %s14 = sphi 0, %s18
      %p15 = scmp.ge.s32.totalorder %s14, 4
      %s21 = sphi 0, %s33
      %s22 = sphi 0, %s29
      %s23 = sphi 0, %s21
      %s24 = sphi 0, %s22
      %s25 = sphi 0, %s23
      %s26 = sphi 0, %s24
      %s38 = sphi 0, %s40
      %s41 = sphi 0, %s38
      %s42 = sphi 0, %s41
      %s58 = sphi 0, %s42
      %s62 = sphi 0, %s62
      %s64 = sphi 0, %s62
      %s65 = sphi 0, %s64
      %s79 = sphi 0, %s65
      %s87 = sphi 0, %s89
      %s90 = sphi 0, %s87
      %s91 = sphi 0, %s90
      %s107 = sphi 0, %s91
      %s111 = sphi 0, %s111
      %s113 = sphi 0, %s111
      %s114 = sphi 0, %s113
      %s128 = sphi 0, %s114
      %s132 = sphi 0, %s132
      %s134 = sphi 0, %s132
      %s135 = sphi 0, %s134
      %s149 = sphi 0, %s135
    $region4: #{tpu_custom_call.1} parent=1 // loop_header_branch
      %17 = sbr.rel (%p15) target = $region8
    $region5: #{tpu_custom_call.1} parent=1 // loop_body
      %s19 = ssub.s32 %s14, 1
      %s20 = ssub.s32 %s14, 2
      %s27 = sadd.s32 1, %s22
      %p28 = scmp.ge.s32.totalorder %s27, 1
      %s29 = scalar_select %p28, 0, %s27
      %s30 = sadd.s32 1, %s21
      %s31 = scalar_select %p28, %s30, %s21
      %p32 = scmp.ge.s32.totalorder %s31, 2
      %s33 = scalar_select %p32, 0, %s31
      %s34 = ssub.s32 %s21, %s33
      %s35 = ssub.s32 %s22, %s29
      %s36 = sor.u32 %s34, %s35
      %p37 = scmp.eq.s32.totalorder %s36, 0
      %s39 = sadd.s32 %s38, 1
      %s40 = scalar_select %p37, %s38, %s39
      %p43 = pneg %p37
      %p44 = scmp.eq.s32.totalorder %s14, 1
      %p45 = por %p43, %p44
      %p46 = scmp.ne.s32.totalorder %s38, %s41
      %p47 = scmp.eq.s32.totalorder %s14, 0
      %p48 = por %p46, %p47
      %p49 = scmp.ne.s32.totalorder %s38, %s41
      %p50 = scmp.eq.s32.totalorder %s19, 1
      %p51 = por %p49, %p50
      %p52 = scmp.ne.s32.totalorder %s41, %s42
      %p53 = scmp.eq.s32.totalorder %s19, 0
      %p54 = por %p52, %p53
      %p55 = scmp.ne.s32.totalorder %s41, %s42
      %p56 = scmp.eq.s32.totalorder %s20, 1
      %p57 = por %p55, %p56
      %p59 = scmp.ne.s32.totalorder %s42, %s58
      %p60 = scmp.eq.s32.totalorder %s20, 0
      %p61 = por %p59, %p60
      %s63 = sadd.s32 %s62, 1
      %p66 = scmp.eq.s32.totalorder %s14, 1
      %p67 = scmp.ne.s32.totalorder %s62, %s64
      %p68 = scmp.eq.s32.totalorder %s14, 0
      %p69 = por %p67, %p68
      %p70 = scmp.ne.s32.totalorder %s62, %s64
      %p71 = scmp.eq.s32.totalorder %s19, 1
      %p72 = por %p70, %p71
      %p73 = scmp.ne.s32.totalorder %s64, %s65
      %p74 = scmp.eq.s32.totalorder %s19, 0
      %p75 = por %p73, %p74
      %p76 = scmp.ne.s32.totalorder %s64, %s65
      %p77 = scmp.eq.s32.totalorder %s20, 1
      %p78 = por %p76, %p77
      %p80 = scmp.ne.s32.totalorder %s65, %s79
      %p81 = scmp.eq.s32.totalorder %s20, 0
      %p82 = por %p80, %p81
      %s83 = ssub.s32 %s21, %s33
      %s84 = ssub.s32 %s22, %s29
      %s85 = sor.u32 %s83, %s84
      %p86 = scmp.eq.s32.totalorder %s85, 0
      %s88 = sadd.s32 %s87, 1
      %s89 = scalar_select %p86, %s87, %s88
      %p92 = pneg %p86
      %p93 = scmp.eq.s32.totalorder %s14, 1
      %p94 = por %p92, %p93
      %p95 = scmp.ne.s32.totalorder %s87, %s90
      %p96 = scmp.eq.s32.totalorder %s14, 0
      %p97 = por %p95, %p96
      %p98 = scmp.ne.s32.totalorder %s87, %s90
      %p99 = scmp.eq.s32.totalorder %s19, 1
      %p100 = por %p98, %p99
      %p101 = scmp.ne.s32.totalorder %s90, %s91
      %p102 = scmp.eq.s32.totalorder %s19, 0
      %p103 = por %p101, %p102
      %p104 = scmp.ne.s32.totalorder %s90, %s91
      %p105 = scmp.eq.s32.totalorder %s20, 1
      %p106 = por %p104, %p105
      %p108 = scmp.ne.s32.totalorder %s91, %s107
      %p109 = scmp.eq.s32.totalorder %s20, 0
      %p110 = por %p108, %p109
      %s112 = sadd.s32 %s111, 1
      %p115 = scmp.eq.s32.totalorder %s14, 1
      %p116 = scmp.ne.s32.totalorder %s111, %s113
      %p117 = scmp.eq.s32.totalorder %s14, 0
      %p118 = por %p116, %p117
      %p119 = scmp.ne.s32.totalorder %s111, %s113
      %p120 = scmp.eq.s32.totalorder %s19, 1
      %p121 = por %p119, %p120
      %p122 = scmp.ne.s32.totalorder %s113, %s114
      %p123 = scmp.eq.s32.totalorder %s19, 0
      %p124 = por %p122, %p123
      %p125 = scmp.ne.s32.totalorder %s113, %s114
      %p126 = scmp.eq.s32.totalorder %s20, 1
      %p127 = por %p125, %p126
      %p129 = scmp.ne.s32.totalorder %s114, %s128
      %p130 = scmp.eq.s32.totalorder %s20, 0
      %p131 = por %p129, %p130
      %s133 = sadd.s32 %s132, 1
      %p136 = scmp.eq.s32.totalorder %s14, 1
      %p137 = scmp.ne.s32.totalorder %s132, %s134
      %p138 = scmp.eq.s32.totalorder %s14, 0
      %p139 = por %p137, %p138
      %p140 = scmp.ne.s32.totalorder %s132, %s134
      %p141 = scmp.eq.s32.totalorder %s19, 1
      %p142 = por %p140, %p141
      %p143 = scmp.ne.s32.totalorder %s134, %s135
      %p144 = scmp.eq.s32.totalorder %s19, 0
      %p145 = por %p143, %p144
      %p146 = scmp.ne.s32.totalorder %s134, %s135
      %p147 = scmp.eq.s32.totalorder %s20, 1
      %p148 = por %p146, %p147
      %p150 = scmp.ne.s32.totalorder %s135, %s149
      %p151 = scmp.eq.s32.totalorder %s20, 0
      %p152 = por %p150, %p151
      %p153 = scmp.le.s32.totalorder 1, %s14
      %p154 = scmp.lt.s32.totalorder %s14, 3
      %p155 = pnand %p153, %p154
      %p156 = pneg %p155
      // Predicated region
      $region9: #{tpu_custom_call.1} parent=5 // pred_check
        _
      $region10: #{tpu_custom_call.1} parent=5 // pred_check_branch
        %158 = sbr.rel (%p155) target = $region12
      $region11: #{tpu_custom_call.1} parent=5 // pred_region
        %s159 = ssub.s32 %s14, 1
        // Predicated region
        $region13: #{tpu_custom_call.1} parent=11 // pred_check
          %p160 = pneg %p75
        $region14: #{tpu_custom_call.1} parent=11 // pred_check_branch
          %162 = sbr.rel (%p160) target = $region16
        $region15: #{tpu_custom_call.1} parent=11 // pred_region
          _
        $region16: #{tpu_custom_call.1} parent=11 // pred_fallthru
          _
      $region12: #{tpu_custom_call.1} parent=5 // pred_fallthru
        _
      %p163 = scmp.lt.s32.totalorder %s14, 2
      // Predicated region
      $region17: #{tpu_custom_call.1} parent=5 // pred_check
        %p164 = pneg %p163
      $region18: #{tpu_custom_call.1} parent=5 // pred_check_branch
        %166 = sbr.rel (%p164) target = $region20
      $region19: #{tpu_custom_call.1} parent=5 // pred_region
        // Predicated region
        $region21: #{tpu_custom_call.1} parent=19 // pred_check
          %p167 = pneg %p48
        $region22: #{tpu_custom_call.1} parent=19 // pred_check_branch
          %169 = sbr.rel (%p167) target = $region24
        $region23: #{tpu_custom_call.1} parent=19 // pred_region
          %s170 = smul.u32 2, %s22
          %p171 = scmp.lt.s32.totalorder %s21, 1
          %s172 = scalar_select %p171, %s21, 1
          %p173 = scmp.lt.s32.totalorder %s170, 1
          %s174 = scalar_select %p173, %s170, 1
          %s175 = smul.addr %s172, 2
          %s176 = sadd.s32 %s174, %s175
          %s177 = smul.addr %s176, 4
          %s178 = scalar_lea.vmem %s0, %s177
          %s179 = smul.u32 2, %s22
        $region24: #{tpu_custom_call.1} parent=19 // pred_fallthru
          _
      $region20: #{tpu_custom_call.1} parent=5 // pred_fallthru
        _
      %p180 = scmp.le.s32.totalorder 1, %s14
      %p181 = scmp.lt.s32.totalorder %s14, 3
      %p182 = pnand %p180, %p181
      %p183 = pneg %p182
      // Predicated region
      $region25: #{tpu_custom_call.1} parent=5 // pred_check
        _
      $region26: #{tpu_custom_call.1} parent=5 // pred_check_branch
        %185 = sbr.rel (%p182) target = $region28
      $region27: #{tpu_custom_call.1} parent=5 // pred_region
        %s186 = ssub.s32 %s14, 1
        %s187 = smul.u32 2, %s24
        %p188 = scmp.lt.s32.totalorder %s23, 1
        %s189 = scalar_select %p188, %s23, 1
        %p190 = scmp.lt.s32.totalorder %s187, 1
        %s191 = scalar_select %p190, %s187, 1
        %s192 = smul.addr %s189, 2
        %s193 = sadd.s32 %s191, %s192
        %s194 = smul.addr %s193, 4
        %s195 = scalar_lea.vmem %s0, %s194
        %p196 = pneg %p54
        %p197 = pneg %p51
        %p198 = pneg %p75
        %p199 = pneg %p72
        %p200 = pneg %p103
        %p201 = pneg %p100
        %s202 = sand.u32 %s90, 1
        %s203 = scalar_lea.sflag [#allocation3], %s202
        %s204 = sand.u32 %s90, 1
        %s205 = smul.addr %s204, 32
        %s206 = scalar_lea.vmem [#allocation2], %s205
        %p207 = pneg %p124
        %p208 = pneg %p121
        %p209 = pneg %p145
        %p210 = pneg %p142
        %s211 = smul.u32 2, %s24
        %p212 = scmp.lt.s32.totalorder %s23, 1
        %s213 = scalar_select %p212, %s23, 1
        %p214 = scmp.lt.s32.totalorder %s211, 1
        %s215 = scalar_select %p214, %s211, 1
        %s216 = smul.addr %s213, 2
        %s217 = sadd.s32 %s215, %s216
        %s218 = smul.addr %s217, 4
        %s219 = scalar_lea.vmem %s0, %s218
        %s220 = smul.u32 2, %s24
        %s221 = smul.u32 2, %s24
        %v222 = vld [vmem:[%s219] sm:$0xff]
        %v223 = vlaneseq
        %v224 = vand.u32 %v223, 127
        %v225 = vadd.s32 %v224, 128
        %vm226 = vcmp.lt.s32.totalorder %v224, 0
        %v227 = vsub.s32 0, %v224
        %v228 = vsel %vm226, %v227, %v224
        %v229 = vshrl.u32 %v228, 4
        %v230 = vand.u32 %v228, 15
        %v231 = vsub.s32 0, %v230
        %v232 = vsel %vm226, %v231, %v230
        %vm233 = vcmp.lt.s32.totalorder %v225, 0
        %v234 = vsub.s32 0, %v225
        %v235 = vsel %vm233, %v234, %v225
        %v236 = vshrl.u32 %v235, 4
        %v237 = vand.u32 %v235, 15
        %v238 = vsub.s32 0, %v237
        %v239 = vsel %vm233, %v238, %v237
        %vm240 = vcmp.ne.s32.totalorder %v232, 0
        %vm241 = vcmp.ne.s32.totalorder %v239, 0
        %vm242 = vcmp.lt.s32.totalorder %v232, 0
        %vm243 = vcmp.lt.s32.totalorder %v239, 0
        %vm244 = vmand %vm242, %vm240
        %vm245 = vmand %vm243, %vm241
        %v246 = vadd.s32 %v232, 16
        %v247 = vadd.s32 %v239, 16
        %v248 = vsel %vm244, %v246, %v232
        %v249 = vsel %vm245, %v247, %v239
        %v251 = vcombine.high %v222, %v222
        %253 = vrot.lane.b32.xlu0 %v222, 3
        %v254 = vpop.permute.xlu0 %253
        %255 = vrot.lane.b32.xlu0 %v251, 3
        %v256 = vpop.permute.xlu0 %255
        %vm257 = vcmp.lt.s32.totalorder %v224, 3
        %v258 = vsel %vm257, %v254, %v256
        %v259 = vsel %vm257, %v256, %v254
        %v260 = vadd.s32 %v248, 4294967293
        %v261 = vadd.s32 %v249, 4294967293
        %vm262 = vcmp.ge.s32.totalorder %v260, 0
        %vm263 = vcmp.ge.s32.totalorder %v261, 0
        %vm264 = vcmp.lt.s32.totalorder %v260, 16
        %vm265 = vcmp.lt.s32.totalorder %v261, 16
        %vm266 = vmand %vm262, %vm264
        %vm267 = vmand %vm263, %vm265
        %v268 = vsel %vm266, 1, 0
        %v269 = vsel %vm267, 1, 0
        %vm270 = vcmp.eq.s32.totalorder %v268, 1
        %vm271 = vcmp.eq.s32.totalorder %v269, 1
        %v272 = vsel %vm270, %v259, 0.0
        %v273 = vsel %vm271, %v258, 0.0
        %v274 = vld [vmem:[%s1] sm:$0xff]
        %v275 = vld [vmem:[%s1 + $0x8] sm:$0xff]
        %276 = vrot.lane.b32.xlu0 %v222, 2
        %v277 = vpop.permute.xlu0 %276
        %278 = vrot.lane.b32.xlu0 %v251, 2
        %v279 = vpop.permute.xlu0 %278
        %vm280 = vcmp.lt.s32.totalorder %v224, 2
        %v281 = vsel %vm280, %v277, %v279
        %v282 = vsel %vm280, %v279, %v277
        %v283 = vadd.s32 %v248, 4294967294
        %v284 = vadd.s32 %v249, 4294967294
        %vm285 = vcmp.ge.s32.totalorder %v283, 0
        %vm286 = vcmp.ge.s32.totalorder %v284, 0
        %vm287 = vcmp.lt.s32.totalorder %v283, 16
        %vm288 = vcmp.lt.s32.totalorder %v284, 16
        %vm289 = vmand %vm285, %vm287
        %vm290 = vmand %vm286, %vm288
        %v291 = vsel %vm289, 1, 0
        %v292 = vsel %vm290, 1, 0
        %vm293 = vcmp.eq.s32.totalorder %v291, 1
        %vm294 = vcmp.eq.s32.totalorder %v292, 1
        %v295 = vsel %vm293, %v282, 0.0
        %v296 = vsel %vm294, %v281, 0.0
        %s297 = scalar_lea.vmem %s1, 16
        %v298 = vld [vmem:[%s297] sm:$0xff]
        %v299 = vld [vmem:[%s297 + $0x8] sm:$0xff]
        %vm300 = vcmask 31744
        %v302 = vsel %vm300, %v298, 0
        %v305 = vsel %vm300, %v299, 0
        %vm307 = vcmask 1043456
        %v309 = vsel %vm307, %v295, 0
        %v312 = vsel %vm307, %v296, 0
        %314 = vmatprep.subr.mxu0 0.0
        %315 = vmatpush1.msra.mxu0 0.0
        %316 = vmatprep.subr.mxu0 0.0
        %317 = vmatpush1.msra.mxu0 0.0
        %318 = vmatprep.subr.mxu0 0.0
        %319 = vmatpush1.msra.mxu0 0.0
        %320 = vmatprep.subr.mxu0 0.0
        %321 = vmatpush1.msra.mxu0 0.0
        %322 = vmatprep.subr.mxu0 0.0
        %323 = vmatpush1.msra.mxu0 0.0
        %324 = vmatprep.subr.mxu0 0.0
        %325 = vmatpush1.msra.mxu0 0.0
        %326 = vmatprep.subr.mxu0 0.0
        %327 = vmatpush1.msra.mxu0 0.0
        %328 = vmatprep.subr.mxu0 0.0
        %329 = vmatpush1.msra.mxu0 0.0
        %330 = vmatprep.subr.mxu0 0.0
        %331 = vmatpush1.msra.mxu0 0.0
        %332 = vmatprep.subr.mxu0 0.0
        %333 = vmatpush1.msra.mxu0 0.0
        %334 = vmatprep.subr.mxu0 0.0
        %335 = vmatpush1.msra.mxu0 0.0
        %336 = vmatprep.subr.mxu0 0.0
        %337 = vmatpush1.msra.mxu0 0.0
        %338 = vmatprep.subr.mxu0 0.0
        %339 = vmatpush1.msra.mxu0 0.0
        %340 = vmatprep.subr.mxu0 0.0
        %341 = vmatpush1.msra.mxu0 0.0
        %342 = vmatprep.subr.mxu0 0.0
        %343 = vmatpush1.msra.mxu0 0.0
        %344 = vmatprep.subr.mxu0 %v312
        %345 = vmatpush1.msra.mxu0 %v309
        %346 = vmatprep.subr.mxu0 0.0
        %347 = vmatpush2.msra.mxu0 0.0
        %348 = vmatprep.subr.mxu0 0.0
        %349 = vmatpush2.msra.mxu0 0.0
        %350 = vmatprep.subr.mxu0 0.0
        %351 = vmatpush2.msra.mxu0 0.0
        %352 = vmatprep.subr.mxu0 0.0
        %353 = vmatpush2.msra.mxu0 0.0
        %354 = vmatprep.subr.mxu0 0.0
        %355 = vmatpush2.msra.mxu0 0.0
        %356 = vmatprep.subr.mxu0 0.0
        %357 = vmatpush2.msra.mxu0 0.0
        %358 = vmatprep.subr.mxu0 0.0
        %359 = vmatpush2.msra.mxu0 0.0
        %360 = vmatprep.subr.mxu0 0.0
        %361 = vmatpush2.msra.mxu0 0.0
        %362 = vmatprep.subr.mxu0 0.0
        %363 = vmatpush2.msra.mxu0 0.0
        %364 = vmatprep.subr.mxu0 0.0
        %365 = vmatpush2.msra.mxu0 0.0
        %366 = vmatprep.subr.mxu0 0.0
        %367 = vmatpush2.msra.mxu0 0.0
        %368 = vmatprep.subr.mxu0 0.0
        %369 = vmatpush2.msra.mxu0 0.0
        %370 = vmatprep.subr.mxu0 0.0
        %371 = vmatpush2.msra.mxu0 0.0
        %372 = vmatprep.subr.mxu0 0.0
        %373 = vmatpush2.msra.mxu0 0.0
        %374 = vmatprep.subr.mxu0 0.0
        %375 = vmatpush2.msra.mxu0 0.0
        %376 = vmatprep.subr.mxu0 0.0
        %377 = vmatpush2.msra.mxu0 0.0
        %378 = vmatprep.mubr.f32.mxu0 0.0
        %379 = vmatmul.mubr.f32.gmra.mxu0 %v302
        %v380 = vpop.f32.mrf.mxu0
        %v381 = vadd.f32 0.0, %v380
        %v382 = vpop.f32.mrf.mxu0
        %v383 = vadd.f32 0.0, %v382
        %384 = vmatprep.mubr.f32.mxu0 0.0
        %385 = vmatmul.mubr.f32.gmra.mxu0 %v305
        %v386 = vpop.f32.mrf.mxu0
        %v387 = vadd.f32 0.0, %v386
        %v388 = vpop.f32.mrf.mxu0
        %v389 = vadd.f32 0.0, %v388
        %390 = vdwg.mxu0
        %v392 = vsel %vm300, %v274, 0
        %v395 = vsel %vm300, %v275, 0
        %v398 = vsel %vm307, %v272, 0
        %v401 = vsel %vm307, %v273, 0
        %403 = vmatprep.subr.mxu0 0.0
        %404 = vmatpush1.msra.mxu0 0.0
        %405 = vmatprep.subr.mxu0 0.0
        %406 = vmatpush1.msra.mxu0 0.0
        %407 = vmatprep.subr.mxu0 0.0
        %408 = vmatpush1.msra.mxu0 0.0
        %409 = vmatprep.subr.mxu0 0.0
        %410 = vmatpush1.msra.mxu0 0.0
        %411 = vmatprep.subr.mxu0 0.0
        %412 = vmatpush1.msra.mxu0 0.0
        %413 = vmatprep.subr.mxu0 0.0
        %414 = vmatpush1.msra.mxu0 0.0
        %415 = vmatprep.subr.mxu0 0.0
        %416 = vmatpush1.msra.mxu0 0.0
        %417 = vmatprep.subr.mxu0 0.0
        %418 = vmatpush1.msra.mxu0 0.0
        %419 = vmatprep.subr.mxu0 0.0
        %420 = vmatpush1.msra.mxu0 0.0
        %421 = vmatprep.subr.mxu0 0.0
        %422 = vmatpush1.msra.mxu0 0.0
        %423 = vmatprep.subr.mxu0 0.0
        %424 = vmatpush1.msra.mxu0 0.0
        %425 = vmatprep.subr.mxu0 0.0
        %426 = vmatpush1.msra.mxu0 0.0
        %427 = vmatprep.subr.mxu0 0.0
        %428 = vmatpush1.msra.mxu0 0.0
        %429 = vmatprep.subr.mxu0 0.0
        %430 = vmatpush1.msra.mxu0 0.0
        %431 = vmatprep.subr.mxu0 0.0
        %432 = vmatpush1.msra.mxu0 0.0
        %433 = vmatprep.subr.mxu0 %v401
        %434 = vmatpush1.msra.mxu0 %v398
        %435 = vmatprep.subr.mxu0 0.0
        %436 = vmatpush2.msra.mxu0 0.0
        %437 = vmatprep.subr.mxu0 0.0
        %438 = vmatpush2.msra.mxu0 0.0
        %439 = vmatprep.subr.mxu0 0.0
        %440 = vmatpush2.msra.mxu0 0.0
        %441 = vmatprep.subr.mxu0 0.0
        %442 = vmatpush2.msra.mxu0 0.0
        %443 = vmatprep.subr.mxu0 0.0
        %444 = vmatpush2.msra.mxu0 0.0
        %445 = vmatprep.subr.mxu0 0.0
        %446 = vmatpush2.msra.mxu0 0.0
        %447 = vmatprep.subr.mxu0 0.0
        %448 = vmatpush2.msra.mxu0 0.0
        %449 = vmatprep.subr.mxu0 0.0
        %450 = vmatpush2.msra.mxu0 0.0
        %451 = vmatprep.subr.mxu0 0.0
        %452 = vmatpush2.msra.mxu0 0.0
        %453 = vmatprep.subr.mxu0 0.0
        %454 = vmatpush2.msra.mxu0 0.0
        %455 = vmatprep.subr.mxu0 0.0
        %456 = vmatpush2.msra.mxu0 0.0
        %457 = vmatprep.subr.mxu0 0.0
        %458 = vmatpush2.msra.mxu0 0.0
        %459 = vmatprep.subr.mxu0 0.0
        %460 = vmatpush2.msra.mxu0 0.0
        %461 = vmatprep.subr.mxu0 0.0
        %462 = vmatpush2.msra.mxu0 0.0
        %463 = vmatprep.subr.mxu0 0.0
        %464 = vmatpush2.msra.mxu0 0.0
        %465 = vmatprep.subr.mxu0 0.0
        %466 = vmatpush2.msra.mxu0 0.0
        %467 = vmatprep.mubr.f32.mxu0 0.0
        %468 = vmatmul.mubr.f32.gmra.mxu0 %v392
        %v469 = vpop.f32.mrf.mxu0
        %v470 = vadd.f32 %v381, %v469
        %v471 = vpop.f32.mrf.mxu0
        %v472 = vadd.f32 %v383, %v471
        %473 = vmatprep.mubr.f32.mxu0 0.0
        %474 = vmatmul.mubr.f32.gmra.mxu0 %v395
        %v475 = vpop.f32.mrf.mxu0
        %v476 = vadd.f32 %v387, %v475
        %v477 = vpop.f32.mrf.mxu0
        %v478 = vadd.f32 %v389, %v477
        %479 = vdwg.mxu0
        %480 = vrot.lane.b32.xlu0 %v222, 1
        %v481 = vpop.permute.xlu0 %480
        %482 = vrot.lane.b32.xlu0 %v251, 1
        %v483 = vpop.permute.xlu0 %482
        %vm484 = vcmp.lt.s32.totalorder %v224, 1
        %v485 = vsel %vm484, %v481, %v483
        %v486 = vsel %vm484, %v483, %v481
        %v487 = vadd.s32 %v248, 4294967295
        %v488 = vadd.s32 %v249, 4294967295
        %vm489 = vcmp.ge.s32.totalorder %v487, 0
        %vm490 = vcmp.ge.s32.totalorder %v488, 0
        %vm491 = vcmp.lt.s32.totalorder %v487, 16
        %vm492 = vcmp.lt.s32.totalorder %v488, 16
        %vm493 = vmand %vm489, %vm491
        %vm494 = vmand %vm490, %vm492
        %v495 = vsel %vm493, 1, 0
        %v496 = vsel %vm494, 1, 0
        %vm497 = vcmp.eq.s32.totalorder %v495, 1
        %vm498 = vcmp.eq.s32.totalorder %v496, 1
        %v499 = vsel %vm497, %v486, 0.0
        %v500 = vsel %vm498, %v485, 0.0
        %s501 = scalar_lea.vmem %s1, 32
        %v502 = vld [vmem:[%s501] sm:$0xff]
        %v503 = vld [vmem:[%s501 + $0x8] sm:$0xff]
        %v505 = vsel %vm300, %v502, 0
        %v508 = vsel %vm300, %v503, 0
        %v511 = vsel %vm307, %v499, 0
        %v514 = vsel %vm307, %v500, 0
        %516 = vmatprep.subr.mxu0 0.0
        %517 = vmatpush1.msra.mxu0 0.0
        %518 = vmatprep.subr.mxu0 0.0
        %519 = vmatpush1.msra.mxu0 0.0
        %520 = vmatprep.subr.mxu0 0.0
        %521 = vmatpush1.msra.mxu0 0.0
        %522 = vmatprep.subr.mxu0 0.0
        %523 = vmatpush1.msra.mxu0 0.0
        %524 = vmatprep.subr.mxu0 0.0
        %525 = vmatpush1.msra.mxu0 0.0
        %526 = vmatprep.subr.mxu0 0.0
        %527 = vmatpush1.msra.mxu0 0.0
        %528 = vmatprep.subr.mxu0 0.0
        %529 = vmatpush1.msra.mxu0 0.0
        %530 = vmatprep.subr.mxu0 0.0
        %531 = vmatpush1.msra.mxu0 0.0
        %532 = vmatprep.subr.mxu0 0.0
        %533 = vmatpush1.msra.mxu0 0.0
        %534 = vmatprep.subr.mxu0 0.0
        %535 = vmatpush1.msra.mxu0 0.0
        %536 = vmatprep.subr.mxu0 0.0
        %537 = vmatpush1.msra.mxu0 0.0
        %538 = vmatprep.subr.mxu0 0.0
        %539 = vmatpush1.msra.mxu0 0.0
        %540 = vmatprep.subr.mxu0 0.0
        %541 = vmatpush1.msra.mxu0 0.0
        %542 = vmatprep.subr.mxu0 0.0
        %543 = vmatpush1.msra.mxu0 0.0
        %544 = vmatprep.subr.mxu0 0.0
        %545 = vmatpush1.msra.mxu0 0.0
        %546 = vmatprep.subr.mxu0 %v514
        %547 = vmatpush1.msra.mxu0 %v511
        %548 = vmatprep.subr.mxu0 0.0
        %549 = vmatpush2.msra.mxu0 0.0
        %550 = vmatprep.subr.mxu0 0.0
        %551 = vmatpush2.msra.mxu0 0.0
        %552 = vmatprep.subr.mxu0 0.0
        %553 = vmatpush2.msra.mxu0 0.0
        %554 = vmatprep.subr.mxu0 0.0
        %555 = vmatpush2.msra.mxu0 0.0
        %556 = vmatprep.subr.mxu0 0.0
        %557 = vmatpush2.msra.mxu0 0.0
        %558 = vmatprep.subr.mxu0 0.0
        %559 = vmatpush2.msra.mxu0 0.0
        %560 = vmatprep.subr.mxu0 0.0
        %561 = vmatpush2.msra.mxu0 0.0
        %562 = vmatprep.subr.mxu0 0.0
        %563 = vmatpush2.msra.mxu0 0.0
        %564 = vmatprep.subr.mxu0 0.0
        %565 = vmatpush2.msra.mxu0 0.0
        %566 = vmatprep.subr.mxu0 0.0
        %567 = vmatpush2.msra.mxu0 0.0
        %568 = vmatprep.subr.mxu0 0.0
        %569 = vmatpush2.msra.mxu0 0.0
        %570 = vmatprep.subr.mxu0 0.0
        %571 = vmatpush2.msra.mxu0 0.0
        %572 = vmatprep.subr.mxu0 0.0
        %573 = vmatpush2.msra.mxu0 0.0
        %574 = vmatprep.subr.mxu0 0.0
        %575 = vmatpush2.msra.mxu0 0.0
        %576 = vmatprep.subr.mxu0 0.0
        %577 = vmatpush2.msra.mxu0 0.0
        %578 = vmatprep.subr.mxu0 0.0
        %579 = vmatpush2.msra.mxu0 0.0
        %580 = vmatprep.mubr.f32.mxu0 0.0
        %581 = vmatmul.mubr.f32.gmra.mxu0 %v505
        %v582 = vpop.f32.mrf.mxu0
        %v583 = vadd.f32 0.0, %v582
        %v584 = vpop.f32.mrf.mxu0
        %v585 = vadd.f32 0.0, %v584
        %586 = vmatprep.mubr.f32.mxu0 0.0
        %587 = vmatmul.mubr.f32.gmra.mxu0 %v508
        %v588 = vpop.f32.mrf.mxu0
        %v589 = vadd.f32 0.0, %v588
        %v590 = vpop.f32.mrf.mxu0
        %v591 = vadd.f32 0.0, %v590
        %592 = vdwg.mxu0
        %v593 = vadd.f32 %v470, %v583
        %v594 = vadd.f32 %v472, %v585
        %v595 = vadd.f32 %v476, %v589
        %v596 = vadd.f32 %v478, %v591
        %s597 = scalar_lea.vmem %s1, 48
        %v598 = vld [vmem:[%s597] sm:$0xff]
        %v599 = vld [vmem:[%s597 + $0x8] sm:$0xff]
        %v601 = vsel %vm300, %v598, 0
        %v604 = vsel %vm300, %v599, 0
        %v606 = vsel %vm307, %v222, 0
        %v608 = vsel %vm307, %v251, 0
        %610 = vmatprep.subr.mxu0 0.0
        %611 = vmatpush1.msra.mxu0 0.0
        %612 = vmatprep.subr.mxu0 0.0
        %613 = vmatpush1.msra.mxu0 0.0
        %614 = vmatprep.subr.mxu0 0.0
        %615 = vmatpush1.msra.mxu0 0.0
        %616 = vmatprep.subr.mxu0 0.0
        %617 = vmatpush1.msra.mxu0 0.0
        %618 = vmatprep.subr.mxu0 0.0
        %619 = vmatpush1.msra.mxu0 0.0
        %620 = vmatprep.subr.mxu0 0.0
        %621 = vmatpush1.msra.mxu0 0.0
        %622 = vmatprep.subr.mxu0 0.0
        %623 = vmatpush1.msra.mxu0 0.0
        %624 = vmatprep.subr.mxu0 0.0
        %625 = vmatpush1.msra.mxu0 0.0
        %626 = vmatprep.subr.mxu0 0.0
        %627 = vmatpush1.msra.mxu0 0.0
        %628 = vmatprep.subr.mxu0 0.0
        %629 = vmatpush1.msra.mxu0 0.0
        %630 = vmatprep.subr.mxu0 0.0
        %631 = vmatpush1.msra.mxu0 0.0
        %632 = vmatprep.subr.mxu0 0.0
        %633 = vmatpush1.msra.mxu0 0.0
        %634 = vmatprep.subr.mxu0 0.0
        %635 = vmatpush1.msra.mxu0 0.0
        %636 = vmatprep.subr.mxu0 0.0
        %637 = vmatpush1.msra.mxu0 0.0
        %638 = vmatprep.subr.mxu0 0.0
        %639 = vmatpush1.msra.mxu0 0.0
        %640 = vmatprep.subr.mxu0 %v608
        %641 = vmatpush1.msra.mxu0 %v606
        %642 = vmatprep.subr.mxu0 0.0
        %643 = vmatpush2.msra.mxu0 0.0
        %644 = vmatprep.subr.mxu0 0.0
        %645 = vmatpush2.msra.mxu0 0.0
        %646 = vmatprep.subr.mxu0 0.0
        %647 = vmatpush2.msra.mxu0 0.0
        %648 = vmatprep.subr.mxu0 0.0
        %649 = vmatpush2.msra.mxu0 0.0
        %650 = vmatprep.subr.mxu0 0.0
        %651 = vmatpush2.msra.mxu0 0.0
        %652 = vmatprep.subr.mxu0 0.0
        %653 = vmatpush2.msra.mxu0 0.0
        %654 = vmatprep.subr.mxu0 0.0
        %655 = vmatpush2.msra.mxu0 0.0
        %656 = vmatprep.subr.mxu0 0.0
        %657 = vmatpush2.msra.mxu0 0.0
        %658 = vmatprep.subr.mxu0 0.0
        %659 = vmatpush2.msra.mxu0 0.0
        %660 = vmatprep.subr.mxu0 0.0
        %661 = vmatpush2.msra.mxu0 0.0
        %662 = vmatprep.subr.mxu0 0.0
        %663 = vmatpush2.msra.mxu0 0.0
        %664 = vmatprep.subr.mxu0 0.0
        %665 = vmatpush2.msra.mxu0 0.0
        %666 = vmatprep.subr.mxu0 0.0
        %667 = vmatpush2.msra.mxu0 0.0
        %668 = vmatprep.subr.mxu0 0.0
        %669 = vmatpush2.msra.mxu0 0.0
        %670 = vmatprep.subr.mxu0 0.0
        %671 = vmatpush2.msra.mxu0 0.0
        %672 = vmatprep.subr.mxu0 0.0
        %673 = vmatpush2.msra.mxu0 0.0
        %674 = vmatprep.mubr.f32.mxu0 0.0
        %675 = vmatmul.mubr.f32.gmra.mxu0 %v601
        %v676 = vpop.f32.mrf.mxu0
        %v677 = vadd.f32 0.0, %v676
        %v678 = vpop.f32.mrf.mxu0
        %v679 = vadd.f32 0.0, %v678
        %680 = vmatprep.mubr.f32.mxu0 0.0
        %681 = vmatmul.mubr.f32.gmra.mxu0 %v604
        %v682 = vpop.f32.mrf.mxu0
        %v683 = vadd.f32 0.0, %v682
        %v684 = vpop.f32.mrf.mxu0
        %v685 = vadd.f32 0.0, %v684
        %686 = vdwg.mxu0
        %v687 = vadd.f32 %v593, %v677
        %v688 = vadd.f32 %v594, %v679
        %v689 = vadd.f32 %v595, %v683
        %v690 = vadd.f32 %v596, %v685
        %691 = vrot.lane.b32.xlu0 %v222, 127
        %v692 = vpop.permute.xlu0 %691
        %693 = vrot.lane.b32.xlu0 %v251, 127
        %v694 = vpop.permute.xlu0 %693
        %vm695 = vcmp.lt.s32.totalorder %v224, 127
        %v696 = vsel %vm695, %v692, %v694
        %v697 = vsel %vm695, %v694, %v692
        %v698 = vadd.s32 %v248, 1
        %v699 = vadd.s32 %v249, 1
        %vm700 = vcmp.ge.s32.totalorder %v698, 0
        %vm701 = vcmp.ge.s32.totalorder %v699, 0
        %vm702 = vcmp.lt.s32.totalorder %v698, 16
        %vm703 = vcmp.lt.s32.totalorder %v699, 16
        %vm704 = vmand %vm700, %vm702
        %vm705 = vmand %vm701, %vm703
        %v706 = vsel %vm704, 1, 0
        %v707 = vsel %vm705, 1, 0
        %vm708 = vcmp.eq.s32.totalorder %v706, 1
        %vm709 = vcmp.eq.s32.totalorder %v707, 1
        %v710 = vsel %vm708, %v696, 0.0
        %v711 = vsel %vm709, %v697, 0.0
        %s712 = scalar_lea.vmem %s1, 64
        %v713 = vld [vmem:[%s712] sm:$0xff]
        %v714 = vld [vmem:[%s712 + $0x8] sm:$0xff]
        %v716 = vsel %vm300, %v713, 0
        %v719 = vsel %vm300, %v714, 0
        %v722 = vsel %vm307, %v710, 0
        %v725 = vsel %vm307, %v711, 0
        %727 = vmatprep.subr.mxu0 0.0
        %728 = vmatpush1.msra.mxu0 0.0
        %729 = vmatprep.subr.mxu0 0.0
        %730 = vmatpush1.msra.mxu0 0.0
        %731 = vmatprep.subr.mxu0 0.0
        %732 = vmatpush1.msra.mxu0 0.0
        %733 = vmatprep.subr.mxu0 0.0
        %734 = vmatpush1.msra.mxu0 0.0
        %735 = vmatprep.subr.mxu0 0.0
        %736 = vmatpush1.msra.mxu0 0.0
        %737 = vmatprep.subr.mxu0 0.0
        %738 = vmatpush1.msra.mxu0 0.0
        %739 = vmatprep.subr.mxu0 0.0
        %740 = vmatpush1.msra.mxu0 0.0
        %741 = vmatprep.subr.mxu0 0.0
        %742 = vmatpush1.msra.mxu0 0.0
        %743 = vmatprep.subr.mxu0 0.0
        %744 = vmatpush1.msra.mxu0 0.0
        %745 = vmatprep.subr.mxu0 0.0
        %746 = vmatpush1.msra.mxu0 0.0
        %747 = vmatprep.subr.mxu0 0.0
        %748 = vmatpush1.msra.mxu0 0.0
        %749 = vmatprep.subr.mxu0 0.0
        %750 = vmatpush1.msra.mxu0 0.0
        %751 = vmatprep.subr.mxu0 0.0
        %752 = vmatpush1.msra.mxu0 0.0
        %753 = vmatprep.subr.mxu0 0.0
        %754 = vmatpush1.msra.mxu0 0.0
        %755 = vmatprep.subr.mxu0 0.0
        %756 = vmatpush1.msra.mxu0 0.0
        %757 = vmatprep.subr.mxu0 %v725
        %758 = vmatpush1.msra.mxu0 %v722
        %759 = vmatprep.subr.mxu0 0.0
        %760 = vmatpush2.msra.mxu0 0.0
        %761 = vmatprep.subr.mxu0 0.0
        %762 = vmatpush2.msra.mxu0 0.0
        %763 = vmatprep.subr.mxu0 0.0
        %764 = vmatpush2.msra.mxu0 0.0
        %765 = vmatprep.subr.mxu0 0.0
        %766 = vmatpush2.msra.mxu0 0.0
        %767 = vmatprep.subr.mxu0 0.0
        %768 = vmatpush2.msra.mxu0 0.0
        %769 = vmatprep.subr.mxu0 0.0
        %770 = vmatpush2.msra.mxu0 0.0
        %771 = vmatprep.subr.mxu0 0.0
        %772 = vmatpush2.msra.mxu0 0.0
        %773 = vmatprep.subr.mxu0 0.0
        %774 = vmatpush2.msra.mxu0 0.0
        %775 = vmatprep.subr.mxu0 0.0
        %776 = vmatpush2.msra.mxu0 0.0
        %777 = vmatprep.subr.mxu0 0.0
        %778 = vmatpush2.msra.mxu0 0.0
        %779 = vmatprep.subr.mxu0 0.0
        %780 = vmatpush2.msra.mxu0 0.0
        %781 = vmatprep.subr.mxu0 0.0
        %782 = vmatpush2.msra.mxu0 0.0
        %783 = vmatprep.subr.mxu0 0.0
        %784 = vmatpush2.msra.mxu0 0.0
        %785 = vmatprep.subr.mxu0 0.0
        %786 = vmatpush2.msra.mxu0 0.0
        %787 = vmatprep.subr.mxu0 0.0
        %788 = vmatpush2.msra.mxu0 0.0
        %789 = vmatprep.subr.mxu0 0.0
        %790 = vmatpush2.msra.mxu0 0.0
        %791 = vmatprep.mubr.f32.mxu0 0.0
        %792 = vmatmul.mubr.f32.gmra.mxu0 %v716
        %v793 = vpop.f32.mrf.mxu0
        %v794 = vadd.f32 0.0, %v793
        %v795 = vpop.f32.mrf.mxu0
        %v796 = vadd.f32 0.0, %v795
        %797 = vmatprep.mubr.f32.mxu0 0.0
        %798 = vmatmul.mubr.f32.gmra.mxu0 %v719
        %v799 = vpop.f32.mrf.mxu0
        %v800 = vadd.f32 0.0, %v799
        %v801 = vpop.f32.mrf.mxu0
        %v802 = vadd.f32 0.0, %v801
        %803 = vdwg.mxu0
        %v804 = vadd.f32 %v687, %v794
        %v805 = vadd.f32 %v688, %v796
        %v806 = vadd.f32 %v689, %v800
        %v807 = vadd.f32 %v690, %v802
        %808 = vrot.lane.b32.xlu0 %v222, 126
        %v809 = vpop.permute.xlu0 %808
        %810 = vrot.lane.b32.xlu0 %v251, 126
        %v811 = vpop.permute.xlu0 %810
        %vm812 = vcmp.lt.s32.totalorder %v224, 126
        %v813 = vsel %vm812, %v809, %v811
        %v814 = vsel %vm812, %v811, %v809
        %v815 = vadd.s32 %v248, 2
        %v816 = vadd.s32 %v249, 2
        %vm817 = vcmp.ge.s32.totalorder %v815, 0
        %vm818 = vcmp.ge.s32.totalorder %v816, 0
        %vm819 = vcmp.lt.s32.totalorder %v815, 16
        %vm820 = vcmp.lt.s32.totalorder %v816, 16
        %vm821 = vmand %vm817, %vm819
        %vm822 = vmand %vm818, %vm820
        %v823 = vsel %vm821, 1, 0
        %v824 = vsel %vm822, 1, 0
        %vm825 = vcmp.eq.s32.totalorder %v823, 1
        %vm826 = vcmp.eq.s32.totalorder %v824, 1
        %v827 = vsel %vm825, %v813, 0.0
        %v828 = vsel %vm826, %v814, 0.0
        %s829 = scalar_lea.vmem %s1, 80
        %v830 = vld [vmem:[%s829] sm:$0xff]
        %v831 = vld [vmem:[%s829 + $0x8] sm:$0xff]
        %v833 = vsel %vm300, %v830, 0
        %v836 = vsel %vm300, %v831, 0
        %v839 = vsel %vm307, %v827, 0
        %v842 = vsel %vm307, %v828, 0
        %844 = vmatprep.subr.mxu0 0.0
        %845 = vmatpush1.msra.mxu0 0.0
        %846 = vmatprep.subr.mxu0 0.0
        %847 = vmatpush1.msra.mxu0 0.0
        %848 = vmatprep.subr.mxu0 0.0
        %849 = vmatpush1.msra.mxu0 0.0
        %850 = vmatprep.subr.mxu0 0.0
        %851 = vmatpush1.msra.mxu0 0.0
        %852 = vmatprep.subr.mxu0 0.0
        %853 = vmatpush1.msra.mxu0 0.0
        %854 = vmatprep.subr.mxu0 0.0
        %855 = vmatpush1.msra.mxu0 0.0
        %856 = vmatprep.subr.mxu0 0.0
        %857 = vmatpush1.msra.mxu0 0.0
        %858 = vmatprep.subr.mxu0 0.0
        %859 = vmatpush1.msra.mxu0 0.0
        %860 = vmatprep.subr.mxu0 0.0
        %861 = vmatpush1.msra.mxu0 0.0
        %862 = vmatprep.subr.mxu0 0.0
        %863 = vmatpush1.msra.mxu0 0.0
        %864 = vmatprep.subr.mxu0 0.0
        %865 = vmatpush1.msra.mxu0 0.0
        %866 = vmatprep.subr.mxu0 0.0
        %867 = vmatpush1.msra.mxu0 0.0
        %868 = vmatprep.subr.mxu0 0.0
        %869 = vmatpush1.msra.mxu0 0.0
        %870 = vmatprep.subr.mxu0 0.0
        %871 = vmatpush1.msra.mxu0 0.0
        %872 = vmatprep.subr.mxu0 0.0
        %873 = vmatpush1.msra.mxu0 0.0
        %874 = vmatprep.subr.mxu0 %v842
        %875 = vmatpush1.msra.mxu0 %v839
        %876 = vmatprep.subr.mxu0 0.0
        %877 = vmatpush2.msra.mxu0 0.0
        %878 = vmatprep.subr.mxu0 0.0
        %879 = vmatpush2.msra.mxu0 0.0
        %880 = vmatprep.subr.mxu0 0.0
        %881 = vmatpush2.msra.mxu0 0.0
        %882 = vmatprep.subr.mxu0 0.0
        %883 = vmatpush2.msra.mxu0 0.0
        %884 = vmatprep.subr.mxu0 0.0
        %885 = vmatpush2.msra.mxu0 0.0
        %886 = vmatprep.subr.mxu0 0.0
        %887 = vmatpush2.msra.mxu0 0.0
        %888 = vmatprep.subr.mxu0 0.0
        %889 = vmatpush2.msra.mxu0 0.0
        %890 = vmatprep.subr.mxu0 0.0
        %891 = vmatpush2.msra.mxu0 0.0
        %892 = vmatprep.subr.mxu0 0.0
        %893 = vmatpush2.msra.mxu0 0.0
        %894 = vmatprep.subr.mxu0 0.0
        %895 = vmatpush2.msra.mxu0 0.0
        %896 = vmatprep.subr.mxu0 0.0
        %897 = vmatpush2.msra.mxu0 0.0
        %898 = vmatprep.subr.mxu0 0.0
        %899 = vmatpush2.msra.mxu0 0.0
        %900 = vmatprep.subr.mxu0 0.0
        %901 = vmatpush2.msra.mxu0 0.0
        %902 = vmatprep.subr.mxu0 0.0
        %903 = vmatpush2.msra.mxu0 0.0
        %904 = vmatprep.subr.mxu0 0.0
        %905 = vmatpush2.msra.mxu0 0.0
        %906 = vmatprep.subr.mxu0 0.0
        %907 = vmatpush2.msra.mxu0 0.0
        %908 = vmatprep.mubr.f32.mxu0 0.0
        %909 = vmatmul.mubr.f32.gmra.mxu0 %v833
        %v910 = vpop.f32.mrf.mxu0
        %v911 = vadd.f32 0.0, %v910
        %v912 = vpop.f32.mrf.mxu0
        %v913 = vadd.f32 0.0, %v912
        %914 = vmatprep.mubr.f32.mxu0 0.0
        %915 = vmatmul.mubr.f32.gmra.mxu0 %v836
        %v916 = vpop.f32.mrf.mxu0
        %v917 = vadd.f32 0.0, %v916
        %v918 = vpop.f32.mrf.mxu0
        %v919 = vadd.f32 0.0, %v918
        %920 = vdwg.mxu0
        %v921 = vadd.f32 %v804, %v911
        %v922 = vadd.f32 %v805, %v913
        %v923 = vadd.f32 %v806, %v917
        %v924 = vadd.f32 %v807, %v919
        %925 = vrot.lane.b32.xlu0 %v222, 125
        %v926 = vpop.permute.xlu0 %925
        %927 = vrot.lane.b32.xlu0 %v251, 125
        %v928 = vpop.permute.xlu0 %927
        %vm929 = vcmp.lt.s32.totalorder %v224, 125
        %v930 = vsel %vm929, %v926, %v928
        %v931 = vsel %vm929, %v928, %v926
        %v932 = vadd.s32 %v248, 3
        %v933 = vadd.s32 %v249, 3
        %vm934 = vcmp.ge.s32.totalorder %v932, 0
        %vm935 = vcmp.ge.s32.totalorder %v933, 0
        %vm936 = vcmp.lt.s32.totalorder %v932, 16
        %vm937 = vcmp.lt.s32.totalorder %v933, 16
        %vm938 = vmand %vm934, %vm936
        %vm939 = vmand %vm935, %vm937
        %v940 = vsel %vm938, 1, 0
        %v941 = vsel %vm939, 1, 0
        %vm942 = vcmp.eq.s32.totalorder %v940, 1
        %vm943 = vcmp.eq.s32.totalorder %v941, 1
        %v944 = vsel %vm942, %v930, 0.0
        %v945 = vsel %vm943, %v931, 0.0
        %s946 = scalar_lea.vmem %s1, 96
        %v947 = vld [vmem:[%s946] sm:$0xff]
        %v948 = vld [vmem:[%s946 + $0x8] sm:$0xff]
        %v950 = vsel %vm300, %v947, 0
        %v953 = vsel %vm300, %v948, 0
        %v956 = vsel %vm307, %v944, 0
        %v959 = vsel %vm307, %v945, 0
        %961 = vmatprep.subr.mxu0 0.0
        %962 = vmatpush1.msra.mxu0 0.0
        %963 = vmatprep.subr.mxu0 0.0
        %964 = vmatpush1.msra.mxu0 0.0
        %965 = vmatprep.subr.mxu0 0.0
        %966 = vmatpush1.msra.mxu0 0.0
        %967 = vmatprep.subr.mxu0 0.0
        %968 = vmatpush1.msra.mxu0 0.0
        %969 = vmatprep.subr.mxu0 0.0
        %970 = vmatpush1.msra.mxu0 0.0
        %971 = vmatprep.subr.mxu0 0.0
        %972 = vmatpush1.msra.mxu0 0.0
        %973 = vmatprep.subr.mxu0 0.0
        %974 = vmatpush1.msra.mxu0 0.0
        %975 = vmatprep.subr.mxu0 0.0
        %976 = vmatpush1.msra.mxu0 0.0
        %977 = vmatprep.subr.mxu0 0.0
        %978 = vmatpush1.msra.mxu0 0.0
        %979 = vmatprep.subr.mxu0 0.0
        %980 = vmatpush1.msra.mxu0 0.0
        %981 = vmatprep.subr.mxu0 0.0
        %982 = vmatpush1.msra.mxu0 0.0
        %983 = vmatprep.subr.mxu0 0.0
        %984 = vmatpush1.msra.mxu0 0.0
        %985 = vmatprep.subr.mxu0 0.0
        %986 = vmatpush1.msra.mxu0 0.0
        %987 = vmatprep.subr.mxu0 0.0
        %988 = vmatpush1.msra.mxu0 0.0
        %989 = vmatprep.subr.mxu0 0.0
        %990 = vmatpush1.msra.mxu0 0.0
        %991 = vmatprep.subr.mxu0 %v959
        %992 = vmatpush1.msra.mxu0 %v956
        %993 = vmatprep.subr.mxu0 0.0
        %994 = vmatpush2.msra.mxu0 0.0
        %995 = vmatprep.subr.mxu0 0.0
        %996 = vmatpush2.msra.mxu0 0.0
        %997 = vmatprep.subr.mxu0 0.0
        %998 = vmatpush2.msra.mxu0 0.0
        %999 = vmatprep.subr.mxu0 0.0
        %1000 = vmatpush2.msra.mxu0 0.0
        %1001 = vmatprep.subr.mxu0 0.0
        %1002 = vmatpush2.msra.mxu0 0.0
        %1003 = vmatprep.subr.mxu0 0.0
        %1004 = vmatpush2.msra.mxu0 0.0
        %1005 = vmatprep.subr.mxu0 0.0
        %1006 = vmatpush2.msra.mxu0 0.0
        %1007 = vmatprep.subr.mxu0 0.0
        %1008 = vmatpush2.msra.mxu0 0.0
        %1009 = vmatprep.subr.mxu0 0.0
        %1010 = vmatpush2.msra.mxu0 0.0
        %1011 = vmatprep.subr.mxu0 0.0
        %1012 = vmatpush2.msra.mxu0 0.0
        %1013 = vmatprep.subr.mxu0 0.0
        %1014 = vmatpush2.msra.mxu0 0.0
        %1015 = vmatprep.subr.mxu0 0.0
        %1016 = vmatpush2.msra.mxu0 0.0
        %1017 = vmatprep.subr.mxu0 0.0
        %1018 = vmatpush2.msra.mxu0 0.0
        %1019 = vmatprep.subr.mxu0 0.0
        %1020 = vmatpush2.msra.mxu0 0.0
        %1021 = vmatprep.subr.mxu0 0.0
        %1022 = vmatpush2.msra.mxu0 0.0
        %1023 = vmatprep.subr.mxu0 0.0
        %1024 = vmatpush2.msra.mxu0 0.0
        %1025 = vmatprep.mubr.f32.mxu0 0.0
        %1026 = vmatmul.mubr.f32.gmra.mxu0 %v950
        %v1027 = vpop.f32.mrf.mxu0
        %v1028 = vadd.f32 0.0, %v1027
        %v1029 = vpop.f32.mrf.mxu0
        %v1030 = vadd.f32 0.0, %v1029
        %1031 = vmatprep.mubr.f32.mxu0 0.0
        %1032 = vmatmul.mubr.f32.gmra.mxu0 %v953
        %v1033 = vpop.f32.mrf.mxu0
        %v1034 = vadd.f32 0.0, %v1033
        %v1035 = vpop.f32.mrf.mxu0
        %v1036 = vadd.f32 0.0, %v1035
        %1037 = vdwg.mxu0
        %v1038 = vadd.f32 %v921, %v1028
        %v1039 = vadd.f32 %v922, %v1030
        %v1040 = vadd.f32 %v923, %v1034
        %v1041 = vadd.f32 %v924, %v1036
        %1042 = vst [vmem:[%s206] sm:$0xff] %v1038
        %1043 = vst [vmem:[%s206 + $0x8] sm:$0xff] %v1039
        %1044 = vst [vmem:[%s206 + $0x10] sm:$0xff] %v1040
        %1045 = vst [vmem:[%s206 + $0x18] sm:$0xff] %v1041
        %p1046 = scmp.eq.s32.totalorder %s23, 0
        %p1047 = scmp.eq.s32.totalorder %s24, 0
        %p1048 = pnand %p1046, %p1047
        %p1049 = pneg %p1048
        // Predicated region
        $region29: #{tpu_custom_call.1} parent=27 // pred_check
          _
        $region30: #{tpu_custom_call.1} parent=27 // pred_check_branch
          %1051 = sbr.rel (%p1048) target = $region32
        $region31: #{tpu_custom_call.1} parent=27 // pred_region
          %vm1052 = vcmask 7168
          %1053 = vst.msk [vmem:[%s3] sm:$0xff] %vm1052, 0.0
          %1054 = vst.msk [vmem:[%s3 + $0x8] sm:$0xff] %vm1052, 0.0
          %1055 = vst.msk [vmem:[%s4] sm:$0xff] %vm1052, 0.0
          %1056 = vst.msk [vmem:[%s4 + $0x8] sm:$0xff] %vm1052, 0.0
        $region32: #{tpu_custom_call.1} parent=27 // pred_fallthru
          _
        %v1057 = vld [vmem:[%s3] sm:$0xff]
        %v1058 = vld [vmem:[%s3 + $0x8] sm:$0xff]
        %v1059 = vadd.f32 %v1038, %v1039
        %1060 = vadd.xlane.f32.xlu0 %v1059
        %v1061 = vpop.xlane.xlu0 %1060
        %v1062 = vadd.f32 %v1040, %v1041
        %1063 = vadd.xlane.f32.xlu0 %v1062
        %v1064 = vpop.xlane.xlu0 %1063
        %v1065 = vadd.f32 %v1057, %v1061
        %v1066 = vadd.f32 %v1058, %v1064
        %vm1067 = vcmask 7168
        %1068 = vst.msk [vmem:[%s3] sm:$0xff] %vm1067, %v1065
        %1069 = vst.msk [vmem:[%s3 + $0x8] sm:$0xff] %vm1067, %v1066
        %v1070 = vld [vmem:[%s4] sm:$0xff]
        %v1071 = vld [vmem:[%s4 + $0x8] sm:$0xff]
        %v1072 = vmul.f32 %v1038, %v1038
        %v1073 = vmul.f32 %v1039, %v1039
        %v1074 = vmul.f32 %v1040, %v1040
        %v1075 = vmul.f32 %v1041, %v1041
        %v1076 = vadd.f32 %v1072, %v1073
        %1077 = vadd.xlane.f32.xlu0 %v1076
        %v1078 = vpop.xlane.xlu0 %1077
        %v1079 = vadd.f32 %v1074, %v1075
        %1080 = vadd.xlane.f32.xlu0 %v1079
        %v1081 = vpop.xlane.xlu0 %1080
        %v1082 = vadd.f32 %v1070, %v1078
        %v1083 = vadd.f32 %v1071, %v1081
        %1084 = vst.msk [vmem:[%s4] sm:$0xff] %vm1067, %v1082
        %1085 = vst.msk [vmem:[%s4 + $0x8] sm:$0xff] %vm1067, %v1083
        %s1086 = sand.u32 %s90, 1
        %s1087 = scalar_lea.sflag [#allocation3], %s1086
        %s1088 = sand.u32 %s90, 1
        %s1089 = smul.addr %s1088, 32
        %s1090 = scalar_lea.vmem [#allocation2], %s1089
        // Predicated region
        $region33: #{tpu_custom_call.1} parent=27 // pred_check
          %p1091 = pneg %p100
        $region34: #{tpu_custom_call.1} parent=27 // pred_check_branch
          %1093 = sbr.rel (%p1091) target = $region36
        $region35: #{tpu_custom_call.1} parent=27 // pred_region
          %s1094 = smul.u32 2, %s24
          %s1096 = ssub.s32 512, 512
          %1097 = vsyncadd %s1087, %s1096
          %s1098 = smul.addr %s23, 4
          %s1099 = sadd.s32 %s1094, %s1098
          %s1100 = smul.addr %s1099, 128
          %s1101 = scalar_lea.hbm %s2, %s1100
          %s1102 = sshll.u32 %s1090, 4
          %s1103 = int_to_ptr.vmem [resolvable:$true] %s1102
          %1108 = dma.vmem_to_hbm [thread:$0]  %s1103, 512, %s1101, %s1087, 256, 256, 16
        $region36: #{tpu_custom_call.1} parent=27 // pred_fallthru
          _
        // Predicated region
        $region37: #{tpu_custom_call.1} parent=27 // pred_check
          %p1109 = pneg %p121
        $region38: #{tpu_custom_call.1} parent=27 // pred_check_branch
          %1111 = sbr.rel (%p1109) target = $region40
        $region39: #{tpu_custom_call.1} parent=27 // pred_region
          _
        $region40: #{tpu_custom_call.1} parent=27 // pred_fallthru
          _
        // Predicated region
        $region41: #{tpu_custom_call.1} parent=27 // pred_check
          %p1112 = pneg %p142
        $region42: #{tpu_custom_call.1} parent=27 // pred_check_branch
          %1114 = sbr.rel (%p1112) target = $region44
        $region43: #{tpu_custom_call.1} parent=27 // pred_region
          _
        $region44: #{tpu_custom_call.1} parent=27 // pred_fallthru
          _
        // Predicated region
        $region45: #{tpu_custom_call.1} parent=27 // pred_check
          %p1115 = pneg %p121
        $region46: #{tpu_custom_call.1} parent=27 // pred_check_branch
          %1117 = sbr.rel (%p1115) target = $region48
        $region47: #{tpu_custom_call.1} parent=27 // pred_region
          _
        $region48: #{tpu_custom_call.1} parent=27 // pred_fallthru
          _
        // Predicated region
        $region49: #{tpu_custom_call.1} parent=27 // pred_check
          %p1118 = pneg %p142
        $region50: #{tpu_custom_call.1} parent=27 // pred_check_branch
          %1120 = sbr.rel (%p1118) target = $region52
        $region51: #{tpu_custom_call.1} parent=27 // pred_region
          _
        $region52: #{tpu_custom_call.1} parent=27 // pred_fallthru
          _
      $region28: #{tpu_custom_call.1} parent=5 // pred_fallthru
        _
      %p1121 = scmp.le.s32.totalorder 2, %s14
      // Predicated region
      $region53: #{tpu_custom_call.1} parent=5 // pred_check
        %p1122 = pneg %p1121
      $region54: #{tpu_custom_call.1} parent=5 // pred_check_branch
        %1124 = sbr.rel (%p1122) target = $region56
      $region55: #{tpu_custom_call.1} parent=5 // pred_region
        %s1125 = ssub.s32 %s14, 2
        // Predicated region
        $region57: #{tpu_custom_call.1} parent=55 // pred_check
          %p1126 = pneg %p106
        $region58: #{tpu_custom_call.1} parent=55 // pred_check_branch
          %1128 = sbr.rel (%p1126) target = $region60
        $region59: #{tpu_custom_call.1} parent=55 // pred_region
          %s1129 = sand.u32 %s91, 1
          %s1130 = scalar_lea.sflag [#allocation3], %s1129
          %s1131 = sand.u32 %s91, 1
          %s1132 = smul.addr %s1131, 32
          %s1133 = scalar_lea.vmem [#allocation2], %s1132
          %1134 = dma.done %s1130, 512
        $region60: #{tpu_custom_call.1} parent=55 // pred_fallthru
          _
      $region56: #{tpu_custom_call.1} parent=5 // pred_fallthru
        _
    $region6: #{tpu_custom_call.1} parent=1 // loop_footer
      %s18 = sadd.s32 1, %s14
    $region7: #{tpu_custom_call.1} parent=1 // loop_footer_branch
      %13 = sbr.rel target = $region3
    $region8: #{tpu_custom_call.1} parent=1 // loop_exit
      _
    %1135 = vsyncpa [#allocation3], 1
    %s1136 = scalar_lea.sflag [#allocation3], 1
    %1137 = vsyncpa %s1136, 1

</llo_original>
